<compile_context>
chip_gen: v7x
topology: tpu7x:2x2x1
jax: 0.10.0
libtpu: 0.0.40
codegen_flags: <defaults>
</compile_context>

<pallas_src>
import math

import numpy as np
import jax
import jax.numpy as jnp
from jax import lax
from jax.experimental import pallas as pl
from jax.experimental.pallas import tpu as pltpu

# ----------------- tiny GPT-NeoX config -----------------
VOCAB = 64
VOCAB_PAD = 128                          # pad lm-head output to 128 lanes (dense vst)
HIDDEN = 32
N_HEADS = 4
HEAD_DIM = HIDDEN // N_HEADS             # 8
N_LAYERS = 2
INTERMEDIATE = 4 * HIDDEN                # 128
SEQ = 8
BATCH = 2
ROTARY_PCT = 0.25                        # GPT-NeoX default
ROTARY_DIM = int(HEAD_DIM * ROTARY_PCT)  # 2
LN_EPS = 1e-5
NEG_INF = -1e9                           # additive mask bias (robust vs finfo.min)


# ============================= fused Pallas kernel =============================

def fused_forward_kernel(
    ids_ref, bias_ref, cos_ref, sin_ref, kvmask_ref, segsum_ref, emb_ref,
    ln1g_ref, ln1b_ref, ln2g_ref, ln2b_ref,
    pw_ref, pb_ref, dw_ref, db_ref,
    f1w_ref, f1b_ref, f2w_ref, f2b_ref,
    flg_ref, flb_ref, wout_ref,
    out_ref,
):
    M = ids_ref.shape[0]                 # B*S = 16 (rows: b*S + s)

    # ---- embedding lookup as one-hot matmul (keeps everything VMEM-resident) ----
    ids = ids_ref[...]                                            # [M, 1] int32
    vocab_iota = lax.broadcasted_iota(jnp.int32, (M, VOCAB), 1)
    one_hot = (vocab_iota == ids).astype(jnp.float32)             # [M, V]
    h = jnp.dot(one_hot, emb_ref[...], preferred_element_type=jnp.float32)  # [M, H]

    cos = cos_ref[...]                                            # [M, H] (1 on non-rotary lanes)
    sin = sin_ref[...]                                            # [M, H] (0 on non-rotary lanes)
    bias_ext = bias_ref[...]                                      # [M, NH*M]
    kv_mask = kvmask_ref[...]                                     # [NH*M, H] block-diagonal mask
    seg_sum = segsum_ref[...]                                     # [NH*M, NH*M] per-head-block sum

    def ln_xhat(x):                                               # shared LN statistics
        mean = jnp.mean(x, axis=-1, keepdims=True)
        var = jnp.mean((x - mean) ** 2, axis=-1, keepdims=True)
        return (x - mean) * lax.rsqrt(var + LN_EPS)

    for l in range(N_LAYERS):                                     # static unrolled
        # ln1 / ln2 act on the same x -> compute mean/var/xhat once, apply both affines
        xhat = ln_xhat(h)
        ln1 = xhat * ln1g_ref[l] + ln1b_ref[l]                    # input_layernorm
        ln2 = xhat * ln2g_ref[l] + ln2b_ref[l]                    # post_attention_layernorm

        # ---- fused projection: [q | k | v | q@R | k@R] in one matmul (R = rotate_half) ----
        proj = jnp.dot(ln1, pw_ref[l],
                       preferred_element_type=jnp.float32) + pb_ref[l]     # [M, 5H]
        # full-width RoPE: pure VPU multiplies/adds, no slicing below 32 lanes, no concat
        q = proj[:, 0 * HIDDEN:1 * HIDDEN] * cos + proj[:, 3 * HIDDEN:4 * HIDDEN] * sin
        k = proj[:, 1 * HIDDEN:2 * HIDDEN] * cos + proj[:, 4 * HIDDEN:5 * HIDDEN] * sin
        v = proj[:, 2 * HIDDEN:3 * HIDDEN]

        # ---- all heads at once: block-diagonal K/V expansion, one masked score matmul ----
        k_bd = jnp.tile(k, (N_HEADS, 1)) * kv_mask                # [NH*M, H]
        v_bd = jnp.tile(v, (N_HEADS, 1)) * kv_mask                # [NH*M, H]
        s = lax.dot_general(q, k_bd, (((1,), (1,)), ((), ())),
                            preferred_element_type=jnp.float32) + bias_ext  # [M, NH*M]
        # single full-row max: constant per row, cancels exactly within each head segment
        s = s - jnp.max(s, axis=-1, keepdims=True)
        p = jnp.exp(s)
        # per-head-block softmax denominator via one tiny matmul (idle MXU), broadcast back
        denom = jnp.dot(p, seg_sum, preferred_element_type=jnp.float32)
        p = p * pl.reciprocal(denom, approx=True)
        ctx = jnp.dot(p, v_bd, preferred_element_type=jnp.float32)          # [M, H] head-major
        attn_out = jnp.dot(ctx, dw_ref[l],
                           preferred_element_type=jnp.float32) + db_ref[l]

        # ---- MLP branch (exact-erf GELU, matches HF "gelu") ----
        mh = jnp.dot(ln2, f1w_ref[l],
                     preferred_element_type=jnp.float32) + f1b_ref[l]       # [M, I]
        mh = 0.5 * mh * (1.0 + lax.erf(mh * 0.7071067811865476))
        mlp_out = jnp.dot(mh, f2w_ref[l],
                          preferred_element_type=jnp.float32) + f2b_ref[l]

        # parallel residual (GPT-NeoX use_parallel_residual=True)
        h = h + attn_out + mlp_out

    # ---- final LayerNorm + lm head (vocab padded to 128 lanes: unmasked store) ----
    xhat = ln_xhat(h)
    lnf = xhat * flg_ref[...] + flb_ref[...]
    out_ref[...] = jnp.dot(lnf, wout_ref[...], preferred_element_type=jnp.float32)


# ======================= trace-time constant / weight prep =======================

def rotary_tables(seq_len):
    inv_freq = 1.0 / (10000.0 ** (jnp.arange(0, ROTARY_DIM, 2, dtype=jnp.float32)
                                  / ROTARY_DIM))
    pos = jnp.arange(seq_len, dtype=jnp.float32)
    freqs = jnp.outer(pos, inv_freq)                       # [S, ROTARY_DIM//2]
    emb = jnp.concatenate([freqs, freqs], axis=-1)         # [S, ROTARY_DIM]
    return jnp.cos(emb), jnp.sin(emb)


def _rope_lane_tables(B, S):
    """cos/sin expanded to the full [M, HIDDEN] q/k lane layout (1/0 on non-rotary lanes)."""
    cos, sin = rotary_tables(S)                            # [S, ROTARY_DIM]
    cos_h = jnp.concatenate([cos, jnp.ones((S, HEAD_DIM - ROTARY_DIM), jnp.float32)], axis=1)
    sin_h = jnp.concatenate([sin, jnp.zeros((S, HEAD_DIM - ROTARY_DIM), jnp.float32)], axis=1)
    return jnp.tile(cos_h, (B, N_HEADS)), jnp.tile(sin_h, (B, N_HEADS))   # [M, HIDDEN] each


def _rotate_half_matrix():
    """R with (x @ R) == rotate_half(x) on each head's rotary lanes, 0 on the rest."""
    half = ROTARY_DIM // 2
    r = np.zeros((HIDDEN, HIDDEN), np.float32)
    for hd in range(N_HEADS):
        base = hd * HEAD_DIM
        for j in range(half):
            r[base + j + half, base + j] = -1.0            # out[j]      = -x[j+half]
            r[base + j, base + j + half] = 1.0             # out[j+half] = +x[j]
    return jnp.asarray(r)


def _deinterleave_qkv(qkv_w, qkv_b):
    """HF GPT-NeoX fused QKV (lane = head*3*D + {q,k,v}*D + d) -> contiguous q|k|v blocks."""
    w = qkv_w.reshape(HIDDEN, N_HEADS, 3, HEAD_DIM)
    b = qkv_b.reshape(1, N_HEADS, 3, HEAD_DIM)
    wq, wk, wv = (w[:, :, i, :].reshape(HIDDEN, HIDDEN) for i in range(3))
    bq, bk, bv = (b[:, :, i, :].reshape(1, HIDDEN) for i in range(3))
    return wq, wk, wv, bq, bk, bv


def _build_fused_projection(params):
    """Per layer: [q*scale | k | v | (q*scale)@R | k@R]  ->  one [H, 5H] weight + [1, 5H] bias."""
    R = _rotate_half_matrix()
    scale = 1.0 / math.sqrt(HEAD_DIM)                      # softmax scale folded into q columns
    ws, bs = [], []
    for l in range(N_LAYERS):
        wq, wk, wv, bq, bk, bv = _deinterleave_qkv(params["qkv_w"][l], params["qkv_b"][l])
        wq, bq = wq * scale, bq * scale
        ws.append(jnp.concatenate([wq, wk, wv, wq @ R, wk @ R], axis=1))
        bs.append(jnp.concatenate([bq, bk, bv, bq @ R, bk @ R], axis=1))
    return jnp.stack(ws), jnp.stack(bs)                    # [L, H, 5H], [L, 1, 5H]


def _attention_constants(B, S):
    M = B * S
    ridx = jnp.arange(M)
    same_batch = (ridx[:, None] // S) == (ridx[None, :] // S)
    causal = (ridx[:, None] % S) >= (ridx[None, :] % S)
    bias = jnp.where(same_batch & causal, 0.0, NEG_INF).astype(jnp.float32)      # [M, M]
    bias_ext = jnp.tile(bias, (1, N_HEADS))                                      # [M, NH*M]
    rows = jnp.arange(N_HEADS * M)
    cols = jnp.arange(HIDDEN)
    kv_mask = ((rows[:, None] // M) == (cols[None, :] // HEAD_DIM)).astype(jnp.float32)
    seg = jnp.arange(N_HEADS * M)
    seg_sum = ((seg[:, None] // M) == (seg[None, :] // M)).astype(jnp.float32)   # [NH*M, NH*M]
    return bias_ext, kv_mask, seg_sum


# ============================ model glue (plain JAX) ============================

def init_params(key):
    keys = iter(jax.random.split(key, 16))

    def nrm(shape):
        return jax.random.normal(next(keys), shape, jnp.float32) * 0.02

    return {
        "embed_in": nrm((VOCAB, HIDDEN)),
        "embed_out_w": nrm((HIDDEN, VOCAB)),               # embed_out has no bias
        "final_ln_g": jnp.ones((1, HIDDEN), jnp.float32),
        "final_ln_b": jnp.zeros((1, HIDDEN), jnp.float32),
        "ln1_g": jnp.ones((N_LAYERS, 1, HIDDEN), jnp.float32),
        "ln1_b": jnp.zeros((N_LAYERS, 1, HIDDEN), jnp.float32),
        "ln2_g": jnp.ones((N_LAYERS, 1, HIDDEN), jnp.float32),
        "ln2_b": jnp.zeros((N_LAYERS, 1, HIDDEN), jnp.float32),
        "qkv_w": nrm((N_LAYERS, HIDDEN, 3 * HIDDEN)),
        "qkv_b": nrm((N_LAYERS, 1, 3 * HIDDEN)),
        "dense_w": nrm((N_LAYERS, HIDDEN, HIDDEN)),
        "dense_b": nrm((N_LAYERS, 1, HIDDEN)),
        "fc1_w": nrm((N_LAYERS, HIDDEN, INTERMEDIATE)),
        "fc1_b": nrm((N_LAYERS, 1, INTERMEDIATE)),
        "fc2_w": nrm((N_LAYERS, INTERMEDIATE, HIDDEN)),
        "fc2_b": nrm((N_LAYERS, 1, HIDDEN)),
    }


def gpt_neox_forward(params, input_ids):
    """BiasTuningModel.forward == backbone (GPT-NeoXForCausalLM) forward -> logits."""
    B, S = input_ids.shape
    M = B * S
    ids2d = input_ids.reshape(M, 1).astype(jnp.int32)

    cos_full, sin_full = _rope_lane_tables(B, S)
    bias_ext, kv_mask, seg_sum = _attention_constants(B, S)
    proj_w, proj_b = _build_fused_projection(params)

    # pad lm-head weight to 128 output lanes so the single HBM store is unmasked
    wout_pad = jnp.pad(params["embed_out_w"], ((0, 0), (0, VOCAB_PAD - VOCAB)))

    args = (ids2d, bias_ext, cos_full, sin_full, kv_mask, seg_sum, params["embed_in"],
            params["ln1_g"], params["ln1_b"], params["ln2_g"], params["ln2_b"],
            proj_w, proj_b, params["dense_w"], params["dense_b"],
            params["fc1_w"], params["fc1_b"], params["fc2_w"], params["fc2_b"],
            params["final_ln_g"], params["final_ln_b"], wout_pad)

    vmem_spec = pl.BlockSpec(memory_space=pltpu.MemorySpace.VMEM)
    logits_pad = pl.pallas_call(
        fused_forward_kernel,
        out_shape=jax.ShapeDtypeStruct((M, VOCAB_PAD), jnp.float32),
        in_specs=[vmem_spec] * len(args),                  # whole-array, VMEM-resident
        out_specs=vmem_spec,
    )(*args)

    return logits_pad[:, :VOCAB].reshape(B, S, VOCAB)


# TODO(synk): generate() / save_pretrained() are host-side utilities with no kernel equivalent;
# only the forward pass is implemented here.

if __name__ == "__main__":
    key = jax.random.PRNGKey(0)
    pkey, ikey = jax.random.split(key)
    params = init_params(pkey)
    input_ids = jax.random.randint(ikey, (BATCH, SEQ), 0, VOCAB, dtype=jnp.int32)

    logits = jax.jit(gpt_neox_forward)(params, input_ids)
    jax.block_until_ready(logits)
    assert logits.shape == (BATCH, SEQ, VOCAB)
    assert bool(jnp.all(jnp.isfinite(logits)))
    print("KERNEL_OK")
</pallas_src>

<mosaic_0001>
module attributes {stable_mosaic.version = 11 : i64} {
  func.func @fused_forward_kernel(%arg0: memref<16x1xi32, #tpu.memory_space<vmem>>, %arg1: memref<16x64xf32, #tpu.memory_space<vmem>>, %arg2: memref<16x32xf32, #tpu.memory_space<vmem>>, %arg3: memref<16x32xf32, #tpu.memory_space<vmem>>, %arg4: memref<64x32xf32, #tpu.memory_space<vmem>>, %arg5: memref<64x64xf32, #tpu.memory_space<vmem>>, %arg6: memref<64x32xf32, #tpu.memory_space<vmem>>, %arg7: memref<2x1x32xf32, #tpu.memory_space<vmem>>, %arg8: memref<2x1x32xf32, #tpu.memory_space<vmem>>, %arg9: memref<2x1x32xf32, #tpu.memory_space<vmem>>, %arg10: memref<2x1x32xf32, #tpu.memory_space<vmem>>, %arg11: memref<2x32x160xf32, #tpu.memory_space<vmem>>, %arg12: memref<2x1x160xf32, #tpu.memory_space<vmem>>, %arg13: memref<2x32x32xf32, #tpu.memory_space<vmem>>, %arg14: memref<2x1x32xf32, #tpu.memory_space<vmem>>, %arg15: memref<2x32x128xf32, #tpu.memory_space<vmem>>, %arg16: memref<2x1x128xf32, #tpu.memory_space<vmem>>, %arg17: memref<2x128x32xf32, #tpu.memory_space<vmem>>, %arg18: memref<2x1x32xf32, #tpu.memory_space<vmem>>, %arg19: memref<1x32xf32, #tpu.memory_space<vmem>>, %arg20: memref<1x32xf32, #tpu.memory_space<vmem>>, %arg21: memref<32x128xf32, #tpu.memory_space<vmem>>, %arg22: memref<16x128xf32, #tpu.memory_space<vmem>>) attributes {dimension_semantics = [], scalar_prefetch = 0 : i64, scratch_operands = 0 : i64, tpu.core_type = #tpu.core_type<tc>} {
    %c0 = arith.constant 0 : index
    %c0_0 = arith.constant 0 : index
    %0 = vector.load %arg0[%c0, %c0_0] : memref<16x1xi32, #tpu.memory_space<vmem>>, vector<16x1xi32>
    %1 = tpu.iota {dimensions = array<i32: 1>} : vector<16x64xi32>
    %2 = vector.broadcast %0 : vector<16x1xi32> to vector<16x64xi32>
    %3 = arith.cmpi eq, %1, %2 : vector<16x64xi32>
    %4 = arith.extui %3 : vector<16x64xi1> to vector<16x64xi32>
    %5 = arith.sitofp %4 : vector<16x64xi32> to vector<16x64xf32>
    %c0_1 = arith.constant 0 : index
    %c0_2 = arith.constant 0 : index
    %6 = vector.load %arg6[%c0_1, %c0_2] : memref<64x32xf32, #tpu.memory_space<vmem>>, vector<64x32xf32>
    %cst = arith.constant dense<0.000000e+00> : vector<16x32xf32>
    %7 = tpu.matmul %5, %6, %cst {dimension_numbers = #tpu.dot_dimension_numbers<[1], [0], [0], [1], [0, 0, 1, 1], [], []>} : vector<16x64xf32>, vector<64x32xf32>, vector<16x32xf32> -> vector<16x32xf32>
    %c0_3 = arith.constant 0 : index
    %c0_4 = arith.constant 0 : index
    %8 = vector.load %arg2[%c0_3, %c0_4] : memref<16x32xf32, #tpu.memory_space<vmem>>, vector<16x32xf32>
    %c0_5 = arith.constant 0 : index
    %c0_6 = arith.constant 0 : index
    %9 = vector.load %arg3[%c0_5, %c0_6] : memref<16x32xf32, #tpu.memory_space<vmem>>, vector<16x32xf32>
    %c0_7 = arith.constant 0 : index
    %c0_8 = arith.constant 0 : index
    %10 = vector.load %arg1[%c0_7, %c0_8] : memref<16x64xf32, #tpu.memory_space<vmem>>, vector<16x64xf32>
    %c0_9 = arith.constant 0 : index
    %c0_10 = arith.constant 0 : index
    %11 = vector.load %arg4[%c0_9, %c0_10] : memref<64x32xf32, #tpu.memory_space<vmem>>, vector<64x32xf32>
    %c0_11 = arith.constant 0 : index
    %c0_12 = arith.constant 0 : index
    %12 = vector.load %arg5[%c0_11, %c0_12] : memref<64x64xf32, #tpu.memory_space<vmem>>, vector<64x64xf32>
    %cst_13 = arith.constant dense<0.000000e+00> : vector<16xf32>
    %13 = vector.multi_reduction <add>, %7, %cst_13 [1] : vector<16x32xf32> to vector<16xf32>
    %14 = vector.shape_cast %13 : vector<16xf32> to vector<16x1xf32>
    %cst_14 = arith.constant 3.200000e+01 : f32
    %15 = vector.broadcast %cst_14 : f32 to vector<16x1xf32>
    %16 = arith.divf %14, %15 : vector<16x1xf32>
    %17 = vector.broadcast %16 : vector<16x1xf32> to vector<16x32xf32>
    %18 = arith.subf %7, %17 : vector<16x32xf32>
    %19 = arith.mulf %18, %18 : vector<16x32xf32>
    %cst_15 = arith.constant dense<0.000000e+00> : vector<16xf32>
    %20 = vector.multi_reduction <add>, %19, %cst_15 [1] : vector<16x32xf32> to vector<16xf32>
    %21 = vector.shape_cast %20 : vector<16xf32> to vector<16x1xf32>
    %cst_16 = arith.constant 3.200000e+01 : f32
    %22 = vector.broadcast %cst_16 : f32 to vector<16x1xf32>
    %23 = arith.divf %21, %22 : vector<16x1xf32>
    %24 = vector.broadcast %16 : vector<16x1xf32> to vector<16x32xf32>
    %25 = arith.subf %7, %24 : vector<16x32xf32>
    %cst_17 = arith.constant 9.99999974E-6 : f32
    %26 = vector.broadcast %cst_17 : f32 to vector<16x1xf32>
    %27 = arith.addf %23, %26 : vector<16x1xf32>
    %28 = math.rsqrt %27 : vector<16x1xf32>
    %29 = vector.broadcast %28 : vector<16x1xf32> to vector<16x32xf32>
    %30 = arith.mulf %25, %29 : vector<16x32xf32>
    %c0_18 = arith.constant 0 : index
    %c0_19 = arith.constant 0 : index
    %c0_20 = arith.constant 0 : index
    %31 = vector.load %arg7[%c0_18, %c0_19, %c0_20] : memref<2x1x32xf32, #tpu.memory_space<vmem>>, vector<1x1x32xf32>
    %32 = vector.shape_cast %31 : vector<1x1x32xf32> to vector<1x32xf32>
    %33 = vector.broadcast %32 : vector<1x32xf32> to vector<16x32xf32>
    %34 = arith.mulf %30, %33 : vector<16x32xf32>
    %c0_21 = arith.constant 0 : index
    %c0_22 = arith.constant 0 : index
    %c0_23 = arith.constant 0 : index
    %35 = vector.load %arg8[%c0_21, %c0_22, %c0_23] : memref<2x1x32xf32, #tpu.memory_space<vmem>>, vector<1x1x32xf32>
    %36 = vector.shape_cast %35 : vector<1x1x32xf32> to vector<1x32xf32>
    %37 = vector.broadcast %36 : vector<1x32xf32> to vector<16x32xf32>
    %38 = arith.addf %34, %37 : vector<16x32xf32>
    %c0_24 = arith.constant 0 : index
    %c0_25 = arith.constant 0 : index
    %c0_26 = arith.constant 0 : index
    %39 = vector.load %arg9[%c0_24, %c0_25, %c0_26] : memref<2x1x32xf32, #tpu.memory_space<vmem>>, vector<1x1x32xf32>
    %40 = vector.shape_cast %39 : vector<1x1x32xf32> to vector<1x32xf32>
    %41 = vector.broadcast %40 : vector<1x32xf32> to vector<16x32xf32>
    %42 = arith.mulf %30, %41 : vector<16x32xf32>
    %c0_27 = arith.constant 0 : index
    %c0_28 = arith.constant 0 : index
    %c0_29 = arith.constant 0 : index
    %43 = vector.load %arg10[%c0_27, %c0_28, %c0_29] : memref<2x1x32xf32, #tpu.memory_space<vmem>>, vector<1x1x32xf32>
    %44 = vector.shape_cast %43 : vector<1x1x32xf32> to vector<1x32xf32>
    %45 = vector.broadcast %44 : vector<1x32xf32> to vector<16x32xf32>
    %46 = arith.addf %42, %45 : vector<16x32xf32>
    %c0_30 = arith.constant 0 : index
    %c0_31 = arith.constant 0 : index
    %c0_32 = arith.constant 0 : index
    %47 = vector.load %arg11[%c0_30, %c0_31, %c0_32] : memref<2x32x160xf32, #tpu.memory_space<vmem>>, vector<1x32x160xf32>
    %48 = vector.shape_cast %47 : vector<1x32x160xf32> to vector<32x160xf32>
    %cst_33 = arith.constant dense<0.000000e+00> : vector<16x160xf32>
    %49 = tpu.matmul %38, %48, %cst_33 {dimension_numbers = #tpu.dot_dimension_numbers<[1], [0], [0], [1], [0, 0, 1, 1], [], []>} : vector<16x32xf32>, vector<32x160xf32>, vector<16x160xf32> -> vector<16x160xf32>
    %c0_34 = arith.constant 0 : index
    %c0_35 = arith.constant 0 : index
    %c0_36 = arith.constant 0 : index
    %50 = vector.load %arg12[%c0_34, %c0_35, %c0_36] : memref<2x1x160xf32, #tpu.memory_space<vmem>>, vector<1x1x160xf32>
    %51 = vector.shape_cast %50 : vector<1x1x160xf32> to vector<1x160xf32>
    %52 = vector.broadcast %51 : vector<1x160xf32> to vector<16x160xf32>
    %53 = arith.addf %49, %52 : vector<16x160xf32>
    %54 = vector.extract_strided_slice %53 {offsets = [0, 0], sizes = [16, 32], strides = [1, 1]} : vector<16x160xf32> to vector<16x32xf32>
    %55 = arith.mulf %54, %8 : vector<16x32xf32>
    %56 = vector.extract_strided_slice %53 {offsets = [0, 96], sizes = [16, 32], strides = [1, 1]} : vector<16x160xf32> to vector<16x32xf32>
    %57 = arith.mulf %56, %9 : vector<16x32xf32>
    %58 = arith.addf %55, %57 : vector<16x32xf32>
    %59 = vector.extract_strided_slice %53 {offsets = [0, 32], sizes = [16, 32], strides = [1, 1]} : vector<16x160xf32> to vector<16x32xf32>
    %60 = arith.mulf %59, %8 : vector<16x32xf32>
    %61 = vector.extract_strided_slice %53 {offsets = [0, 128], sizes = [16, 32], strides = [1, 1]} : vector<16x160xf32> to vector<16x32xf32>
    %62 = arith.mulf %61, %9 : vector<16x32xf32>
    %63 = arith.addf %60, %62 : vector<16x32xf32>
    %64 = vector.extract_strided_slice %53 {offsets = [0, 64], sizes = [16, 32], strides = [1, 1]} : vector<16x160xf32> to vector<16x32xf32>
    %65 = tpu.concatenate %63, %63, %63, %63 in 0 : vector<16x32xf32>, vector<16x32xf32>, vector<16x32xf32>, vector<16x32xf32> -> vector<64x32xf32>
    %66 = arith.mulf %65, %11 : vector<64x32xf32>
    %67 = tpu.concatenate %64, %64, %64, %64 in 0 : vector<16x32xf32>, vector<16x32xf32>, vector<16x32xf32>, vector<16x32xf32> -> vector<64x32xf32>
    %68 = arith.mulf %67, %11 : vector<64x32xf32>
    %cst_37 = arith.constant dense<0.000000e+00> : vector<16x64xf32>
    %69 = tpu.matmul %58, %66, %cst_37 {dimension_numbers = #tpu.dot_dimension_numbers<[1], [1], [0], [0], [0, 0, 1, 0], [], []>} : vector<16x32xf32>, vector<64x32xf32>, vector<16x64xf32> -> vector<16x64xf32>
    %70 = arith.addf %69, %10 : vector<16x64xf32>
    %cst_38 = arith.constant dense<0xFF800000> : vector<16xf32>
    %71 = vector.multi_reduction <maximumf>, %70, %cst_38 [1] : vector<16x64xf32> to vector<16xf32>
    %72 = vector.shape_cast %71 : vector<16xf32> to vector<16x1xf32>
    %73 = vector.broadcast %72 : vector<16x1xf32> to vector<16x64xf32>
    %74 = arith.subf %70, %73 : vector<16x64xf32>
    %75 = math.exp %74 : vector<16x64xf32>
    %cst_39 = arith.constant dense<0.000000e+00> : vector<16x64xf32>
    %76 = tpu.matmul %75, %12, %cst_39 {dimension_numbers = #tpu.dot_dimension_numbers<[1], [0], [0], [1], [0, 0, 1, 1], [], []>} : vector<16x64xf32>, vector<64x64xf32>, vector<16x64xf32> -> vector<16x64xf32>
    %77 = tpu.reciprocal %76 {approx = true} : vector<16x64xf32> -> vector<16x64xf32>
    %78 = arith.mulf %75, %77 : vector<16x64xf32>
    %cst_40 = arith.constant dense<0.000000e+00> : vector<16x32xf32>
    %79 = tpu.matmul %78, %68, %cst_40 {dimension_numbers = #tpu.dot_dimension_numbers<[1], [0], [0], [1], [0, 0, 1, 1], [], []>} : vector<16x64xf32>, vector<64x32xf32>, vector<16x32xf32> -> vector<16x32xf32>
    %c0_41 = arith.constant 0 : index
    %c0_42 = arith.constant 0 : index
    %c0_43 = arith.constant 0 : index
    %80 = vector.load %arg13[%c0_41, %c0_42, %c0_43] : memref<2x32x32xf32, #tpu.memory_space<vmem>>, vector<1x32x32xf32>
    %81 = vector.shape_cast %80 : vector<1x32x32xf32> to vector<32x32xf32>
    %cst_44 = arith.constant dense<0.000000e+00> : vector<16x32xf32>
    %82 = tpu.matmul %79, %81, %cst_44 {dimension_numbers = #tpu.dot_dimension_numbers<[1], [0], [0], [1], [0, 0, 1, 1], [], []>} : vector<16x32xf32>, vector<32x32xf32>, vector<16x32xf32> -> vector<16x32xf32>
    %c0_45 = arith.constant 0 : index
    %c0_46 = arith.constant 0 : index
    %c0_47 = arith.constant 0 : index
    %83 = vector.load %arg14[%c0_45, %c0_46, %c0_47] : memref<2x1x32xf32, #tpu.memory_space<vmem>>, vector<1x1x32xf32>
    %84 = vector.shape_cast %83 : vector<1x1x32xf32> to vector<1x32xf32>
    %85 = vector.broadcast %84 : vector<1x32xf32> to vector<16x32xf32>
    %86 = arith.addf %82, %85 : vector<16x32xf32>
    %c0_48 = arith.constant 0 : index
    %c0_49 = arith.constant 0 : index
    %c0_50 = arith.constant 0 : index
    %87 = vector.load %arg15[%c0_48, %c0_49, %c0_50] : memref<2x32x128xf32, #tpu.memory_space<vmem>>, vector<1x32x128xf32>
    %88 = vector.shape_cast %87 : vector<1x32x128xf32> to vector<32x128xf32>
    %cst_51 = arith.constant dense<0.000000e+00> : vector<16x128xf32>
    %89 = tpu.matmul %46, %88, %cst_51 {dimension_numbers = #tpu.dot_dimension_numbers<[1], [0], [0], [1], [0, 0, 1, 1], [], []>} : vector<16x32xf32>, vector<32x128xf32>, vector<16x128xf32> -> vector<16x128xf32>
    %c0_52 = arith.constant 0 : index
    %c0_53 = arith.constant 0 : index
    %c0_54 = arith.constant 0 : index
    %90 = vector.load %arg16[%c0_52, %c0_53, %c0_54] : memref<2x1x128xf32, #tpu.memory_space<vmem>>, vector<1x1x128xf32>
    %91 = vector.shape_cast %90 : vector<1x1x128xf32> to vector<1x128xf32>
    %92 = vector.broadcast %91 : vector<1x128xf32> to vector<16x128xf32>
    %93 = arith.addf %89, %92 : vector<16x128xf32>
    %cst_55 = arith.constant 5.000000e-01 : f32
    %94 = vector.broadcast %cst_55 : f32 to vector<16x128xf32>
    %95 = arith.mulf %94, %93 : vector<16x128xf32>
    %cst_56 = arith.constant 0.707106769 : f32
    %96 = vector.broadcast %cst_56 : f32 to vector<16x128xf32>
    %97 = arith.mulf %93, %96 : vector<16x128xf32>
    %98 = math.erf %97 : vector<16x128xf32>
    %cst_57 = arith.constant 1.000000e+00 : f32
    %99 = vector.broadcast %cst_57 : f32 to vector<16x128xf32>
    %100 = arith.addf %99, %98 : vector<16x128xf32>
    %101 = arith.mulf %95, %100 : vector<16x128xf32>
    %c0_58 = arith.constant 0 : index
    %c0_59 = arith.constant 0 : index
    %c0_60 = arith.constant 0 : index
    %102 = vector.load %arg17[%c0_58, %c0_59, %c0_60] : memref<2x128x32xf32, #tpu.memory_space<vmem>>, vector<1x128x32xf32>
    %103 = vector.shape_cast %102 : vector<1x128x32xf32> to vector<128x32xf32>
    %cst_61 = arith.constant dense<0.000000e+00> : vector<16x32xf32>
    %104 = tpu.matmul %101, %103, %cst_61 {dimension_numbers = #tpu.dot_dimension_numbers<[1], [0], [0], [1], [0, 0, 1, 1], [], []>} : vector<16x128xf32>, vector<128x32xf32>, vector<16x32xf32> -> vector<16x32xf32>
    %c0_62 = arith.constant 0 : index
    %c0_63 = arith.constant 0 : index
    %c0_64 = arith.constant 0 : index
    %105 = vector.load %arg18[%c0_62, %c0_63, %c0_64] : memref<2x1x32xf32, #tpu.memory_space<vmem>>, vector<1x1x32xf32>
    %106 = vector.shape_cast %105 : vector<1x1x32xf32> to vector<1x32xf32>
    %107 = vector.broadcast %106 : vector<1x32xf32> to vector<16x32xf32>
    %108 = arith.addf %104, %107 : vector<16x32xf32>
    %109 = arith.addf %7, %86 : vector<16x32xf32>
    %110 = arith.addf %109, %108 : vector<16x32xf32>
    %cst_65 = arith.constant dense<0.000000e+00> : vector<16xf32>
    %111 = vector.multi_reduction <add>, %110, %cst_65 [1] : vector<16x32xf32> to vector<16xf32>
    %112 = vector.shape_cast %111 : vector<16xf32> to vector<16x1xf32>
    %cst_66 = arith.constant 3.200000e+01 : f32
    %113 = vector.broadcast %cst_66 : f32 to vector<16x1xf32>
    %114 = arith.divf %112, %113 : vector<16x1xf32>
    %115 = vector.broadcast %114 : vector<16x1xf32> to vector<16x32xf32>
    %116 = arith.subf %110, %115 : vector<16x32xf32>
    %117 = arith.mulf %116, %116 : vector<16x32xf32>
    %cst_67 = arith.constant dense<0.000000e+00> : vector<16xf32>
    %118 = vector.multi_reduction <add>, %117, %cst_67 [1] : vector<16x32xf32> to vector<16xf32>
    %119 = vector.shape_cast %118 : vector<16xf32> to vector<16x1xf32>
    %cst_68 = arith.constant 3.200000e+01 : f32
    %120 = vector.broadcast %cst_68 : f32 to vector<16x1xf32>
    %121 = arith.divf %119, %120 : vector<16x1xf32>
    %122 = vector.broadcast %114 : vector<16x1xf32> to vector<16x32xf32>
    %123 = arith.subf %110, %122 : vector<16x32xf32>
    %cst_69 = arith.constant 9.99999974E-6 : f32
    %124 = vector.broadcast %cst_69 : f32 to vector<16x1xf32>
    %125 = arith.addf %121, %124 : vector<16x1xf32>
    %126 = math.rsqrt %125 : vector<16x1xf32>
    %127 = vector.broadcast %126 : vector<16x1xf32> to vector<16x32xf32>
    %128 = arith.mulf %123, %127 : vector<16x32xf32>
    %c1 = arith.constant 1 : index
    %c0_70 = arith.constant 0 : index
    %c0_71 = arith.constant 0 : index
    %129 = vector.load %arg7[%c1, %c0_70, %c0_71] : memref<2x1x32xf32, #tpu.memory_space<vmem>>, vector<1x1x32xf32>
    %130 = vector.shape_cast %129 : vector<1x1x32xf32> to vector<1x32xf32>
    %131 = vector.broadcast %130 : vector<1x32xf32> to vector<16x32xf32>
    %132 = arith.mulf %128, %131 : vector<16x32xf32>
    %c1_72 = arith.constant 1 : index
    %c0_73 = arith.constant 0 : index
    %c0_74 = arith.constant 0 : index
    %133 = vector.load %arg8[%c1_72, %c0_73, %c0_74] : memref<2x1x32xf32, #tpu.memory_space<vmem>>, vector<1x1x32xf32>
    %134 = vector.shape_cast %133 : vector<1x1x32xf32> to vector<1x32xf32>
    %135 = vector.broadcast %134 : vector<1x32xf32> to vector<16x32xf32>
    %136 = arith.addf %132, %135 : vector<16x32xf32>
    %c1_75 = arith.constant 1 : index
    %c0_76 = arith.constant 0 : index
    %c0_77 = arith.constant 0 : index
    %137 = vector.load %arg9[%c1_75, %c0_76, %c0_77] : memref<2x1x32xf32, #tpu.memory_space<vmem>>, vector<1x1x32xf32>
    %138 = vector.shape_cast %137 : vector<1x1x32xf32> to vector<1x32xf32>
    %139 = vector.broadcast %138 : vector<1x32xf32> to vector<16x32xf32>
    %140 = arith.mulf %128, %139 : vector<16x32xf32>
    %c1_78 = arith.constant 1 : index
    %c0_79 = arith.constant 0 : index
    %c0_80 = arith.constant 0 : index
    %141 = vector.load %arg10[%c1_78, %c0_79, %c0_80] : memref<2x1x32xf32, #tpu.memory_space<vmem>>, vector<1x1x32xf32>
    %142 = vector.shape_cast %141 : vector<1x1x32xf32> to vector<1x32xf32>
    %143 = vector.broadcast %142 : vector<1x32xf32> to vector<16x32xf32>
    %144 = arith.addf %140, %143 : vector<16x32xf32>
    %c1_81 = arith.constant 1 : index
    %c0_82 = arith.constant 0 : index
    %c0_83 = arith.constant 0 : index
    %145 = vector.load %arg11[%c1_81, %c0_82, %c0_83] : memref<2x32x160xf32, #tpu.memory_space<vmem>>, vector<1x32x160xf32>
    %146 = vector.shape_cast %145 : vector<1x32x160xf32> to vector<32x160xf32>
    %cst_84 = arith.constant dense<0.000000e+00> : vector<16x160xf32>
    %147 = tpu.matmul %136, %146, %cst_84 {dimension_numbers = #tpu.dot_dimension_numbers<[1], [0], [0], [1], [0, 0, 1, 1], [], []>} : vector<16x32xf32>, vector<32x160xf32>, vector<16x160xf32> -> vector<16x160xf32>
    %c1_85 = arith.constant 1 : index
    %c0_86 = arith.constant 0 : index
    %c0_87 = arith.constant 0 : index
    %148 = vector.load %arg12[%c1_85, %c0_86, %c0_87] : memref<2x1x160xf32, #tpu.memory_space<vmem>>, vector<1x1x160xf32>
    %149 = vector.shape_cast %148 : vector<1x1x160xf32> to vector<1x160xf32>
    %150 = vector.broadcast %149 : vector<1x160xf32> to vector<16x160xf32>
    %151 = arith.addf %147, %150 : vector<16x160xf32>
    %152 = vector.extract_strided_slice %151 {offsets = [0, 0], sizes = [16, 32], strides = [1, 1]} : vector<16x160xf32> to vector<16x32xf32>
    %153 = arith.mulf %152, %8 : vector<16x32xf32>
    %154 = vector.extract_strided_slice %151 {offsets = [0, 96], sizes = [16, 32], strides = [1, 1]} : vector<16x160xf32> to vector<16x32xf32>
    %155 = arith.mulf %154, %9 : vector<16x32xf32>
    %156 = arith.addf %153, %155 : vector<16x32xf32>
    %157 = vector.extract_strided_slice %151 {offsets = [0, 32], sizes = [16, 32], strides = [1, 1]} : vector<16x160xf32> to vector<16x32xf32>
    %158 = arith.mulf %157, %8 : vector<16x32xf32>
    %159 = vector.extract_strided_slice %151 {offsets = [0, 128], sizes = [16, 32], strides = [1, 1]} : vector<16x160xf32> to vector<16x32xf32>
    %160 = arith.mulf %159, %9 : vector<16x32xf32>
    %161 = arith.addf %158, %160 : vector<16x32xf32>
    %162 = vector.extract_strided_slice %151 {offsets = [0, 64], sizes = [16, 32], strides = [1, 1]} : vector<16x160xf32> to vector<16x32xf32>
    %163 = tpu.concatenate %161, %161, %161, %161 in 0 : vector<16x32xf32>, vector<16x32xf32>, vector<16x32xf32>, vector<16x32xf32> -> vector<64x32xf32>
    %164 = arith.mulf %163, %11 : vector<64x32xf32>
    %165 = tpu.concatenate %162, %162, %162, %162 in 0 : vector<16x32xf32>, vector<16x32xf32>, vector<16x32xf32>, vector<16x32xf32> -> vector<64x32xf32>
    %166 = arith.mulf %165, %11 : vector<64x32xf32>
    %cst_88 = arith.constant dense<0.000000e+00> : vector<16x64xf32>
    %167 = tpu.matmul %156, %164, %cst_88 {dimension_numbers = #tpu.dot_dimension_numbers<[1], [1], [0], [0], [0, 0, 1, 0], [], []>} : vector<16x32xf32>, vector<64x32xf32>, vector<16x64xf32> -> vector<16x64xf32>
    %168 = arith.addf %167, %10 : vector<16x64xf32>
    %cst_89 = arith.constant dense<0xFF800000> : vector<16xf32>
    %169 = vector.multi_reduction <maximumf>, %168, %cst_89 [1] : vector<16x64xf32> to vector<16xf32>
    %170 = vector.shape_cast %169 : vector<16xf32> to vector<16x1xf32>
    %171 = vector.broadcast %170 : vector<16x1xf32> to vector<16x64xf32>
    %172 = arith.subf %168, %171 : vector<16x64xf32>
    %173 = math.exp %172 : vector<16x64xf32>
    %cst_90 = arith.constant dense<0.000000e+00> : vector<16x64xf32>
    %174 = tpu.matmul %173, %12, %cst_90 {dimension_numbers = #tpu.dot_dimension_numbers<[1], [0], [0], [1], [0, 0, 1, 1], [], []>} : vector<16x64xf32>, vector<64x64xf32>, vector<16x64xf32> -> vector<16x64xf32>
    %175 = tpu.reciprocal %174 {approx = true} : vector<16x64xf32> -> vector<16x64xf32>
    %176 = arith.mulf %173, %175 : vector<16x64xf32>
    %cst_91 = arith.constant dense<0.000000e+00> : vector<16x32xf32>
    %177 = tpu.matmul %176, %166, %cst_91 {dimension_numbers = #tpu.dot_dimension_numbers<[1], [0], [0], [1], [0, 0, 1, 1], [], []>} : vector<16x64xf32>, vector<64x32xf32>, vector<16x32xf32> -> vector<16x32xf32>
    %c1_92 = arith.constant 1 : index
    %c0_93 = arith.constant 0 : index
    %c0_94 = arith.constant 0 : index
    %178 = vector.load %arg13[%c1_92, %c0_93, %c0_94] : memref<2x32x32xf32, #tpu.memory_space<vmem>>, vector<1x32x32xf32>
    %179 = vector.shape_cast %178 : vector<1x32x32xf32> to vector<32x32xf32>
    %cst_95 = arith.constant dense<0.000000e+00> : vector<16x32xf32>
    %180 = tpu.matmul %177, %179, %cst_95 {dimension_numbers = #tpu.dot_dimension_numbers<[1], [0], [0], [1], [0, 0, 1, 1], [], []>} : vector<16x32xf32>, vector<32x32xf32>, vector<16x32xf32> -> vector<16x32xf32>
    %c1_96 = arith.constant 1 : index
    %c0_97 = arith.constant 0 : index
    %c0_98 = arith.constant 0 : index
    %181 = vector.load %arg14[%c1_96, %c0_97, %c0_98] : memref<2x1x32xf32, #tpu.memory_space<vmem>>, vector<1x1x32xf32>
    %182 = vector.shape_cast %181 : vector<1x1x32xf32> to vector<1x32xf32>
    %183 = vector.broadcast %182 : vector<1x32xf32> to vector<16x32xf32>
    %184 = arith.addf %180, %183 : vector<16x32xf32>
    %c1_99 = arith.constant 1 : index
    %c0_100 = arith.constant 0 : index
    %c0_101 = arith.constant 0 : index
    %185 = vector.load %arg15[%c1_99, %c0_100, %c0_101] : memref<2x32x128xf32, #tpu.memory_space<vmem>>, vector<1x32x128xf32>
    %186 = vector.shape_cast %185 : vector<1x32x128xf32> to vector<32x128xf32>
    %cst_102 = arith.constant dense<0.000000e+00> : vector<16x128xf32>
    %187 = tpu.matmul %144, %186, %cst_102 {dimension_numbers = #tpu.dot_dimension_numbers<[1], [0], [0], [1], [0, 0, 1, 1], [], []>} : vector<16x32xf32>, vector<32x128xf32>, vector<16x128xf32> -> vector<16x128xf32>
    %c1_103 = arith.constant 1 : index
    %c0_104 = arith.constant 0 : index
    %c0_105 = arith.constant 0 : index
    %188 = vector.load %arg16[%c1_103, %c0_104, %c0_105] : memref<2x1x128xf32, #tpu.memory_space<vmem>>, vector<1x1x128xf32>
    %189 = vector.shape_cast %188 : vector<1x1x128xf32> to vector<1x128xf32>
    %190 = vector.broadcast %189 : vector<1x128xf32> to vector<16x128xf32>
    %191 = arith.addf %187, %190 : vector<16x128xf32>
    %cst_106 = arith.constant 5.000000e-01 : f32
    %192 = vector.broadcast %cst_106 : f32 to vector<16x128xf32>
    %193 = arith.mulf %192, %191 : vector<16x128xf32>
    %cst_107 = arith.constant 0.707106769 : f32
    %194 = vector.broadcast %cst_107 : f32 to vector<16x128xf32>
    %195 = arith.mulf %191, %194 : vector<16x128xf32>
    %196 = math.erf %195 : vector<16x128xf32>
    %cst_108 = arith.constant 1.000000e+00 : f32
    %197 = vector.broadcast %cst_108 : f32 to vector<16x128xf32>
    %198 = arith.addf %197, %196 : vector<16x128xf32>
    %199 = arith.mulf %193, %198 : vector<16x128xf32>
    %c1_109 = arith.constant 1 : index
    %c0_110 = arith.constant 0 : index
    %c0_111 = arith.constant 0 : index
    %200 = vector.load %arg17[%c1_109, %c0_110, %c0_111] : memref<2x128x32xf32, #tpu.memory_space<vmem>>, vector<1x128x32xf32>
    %201 = vector.shape_cast %200 : vector<1x128x32xf32> to vector<128x32xf32>
    %cst_112 = arith.constant dense<0.000000e+00> : vector<16x32xf32>
    %202 = tpu.matmul %199, %201, %cst_112 {dimension_numbers = #tpu.dot_dimension_numbers<[1], [0], [0], [1], [0, 0, 1, 1], [], []>} : vector<16x128xf32>, vector<128x32xf32>, vector<16x32xf32> -> vector<16x32xf32>
    %c1_113 = arith.constant 1 : index
    %c0_114 = arith.constant 0 : index
    %c0_115 = arith.constant 0 : index
    %203 = vector.load %arg18[%c1_113, %c0_114, %c0_115] : memref<2x1x32xf32, #tpu.memory_space<vmem>>, vector<1x1x32xf32>
    %204 = vector.shape_cast %203 : vector<1x1x32xf32> to vector<1x32xf32>
    %205 = vector.broadcast %204 : vector<1x32xf32> to vector<16x32xf32>
    %206 = arith.addf %202, %205 : vector<16x32xf32>
    %207 = arith.addf %110, %184 : vector<16x32xf32>
    %208 = arith.addf %207, %206 : vector<16x32xf32>
    %cst_116 = arith.constant dense<0.000000e+00> : vector<16xf32>
    %209 = vector.multi_reduction <add>, %208, %cst_116 [1] : vector<16x32xf32> to vector<16xf32>
    %210 = vector.shape_cast %209 : vector<16xf32> to vector<16x1xf32>
    %cst_117 = arith.constant 3.200000e+01 : f32
    %211 = vector.broadcast %cst_117 : f32 to vector<16x1xf32>
    %212 = arith.divf %210, %211 : vector<16x1xf32>
    %213 = vector.broadcast %212 : vector<16x1xf32> to vector<16x32xf32>
    %214 = arith.subf %208, %213 : vector<16x32xf32>
    %215 = arith.mulf %214, %214 : vector<16x32xf32>
    %cst_118 = arith.constant dense<0.000000e+00> : vector<16xf32>
    %216 = vector.multi_reduction <add>, %215, %cst_118 [1] : vector<16x32xf32> to vector<16xf32>
    %217 = vector.shape_cast %216 : vector<16xf32> to vector<16x1xf32>
    %cst_119 = arith.constant 3.200000e+01 : f32
    %218 = vector.broadcast %cst_119 : f32 to vector<16x1xf32>
    %219 = arith.divf %217, %218 : vector<16x1xf32>
    %220 = vector.broadcast %212 : vector<16x1xf32> to vector<16x32xf32>
    %221 = arith.subf %208, %220 : vector<16x32xf32>
    %cst_120 = arith.constant 9.99999974E-6 : f32
    %222 = vector.broadcast %cst_120 : f32 to vector<16x1xf32>
    %223 = arith.addf %219, %222 : vector<16x1xf32>
    %224 = math.rsqrt %223 : vector<16x1xf32>
    %225 = vector.broadcast %224 : vector<16x1xf32> to vector<16x32xf32>
    %226 = arith.mulf %221, %225 : vector<16x32xf32>
    %c0_121 = arith.constant 0 : index
    %c0_122 = arith.constant 0 : index
    %227 = vector.load %arg19[%c0_121, %c0_122] : memref<1x32xf32, #tpu.memory_space<vmem>>, vector<1x32xf32>
    %228 = vector.broadcast %227 : vector<1x32xf32> to vector<16x32xf32>
    %229 = arith.mulf %226, %228 : vector<16x32xf32>
    %c0_123 = arith.constant 0 : index
    %c0_124 = arith.constant 0 : index
    %230 = vector.load %arg20[%c0_123, %c0_124] : memref<1x32xf32, #tpu.memory_space<vmem>>, vector<1x32xf32>
    %231 = vector.broadcast %230 : vector<1x32xf32> to vector<16x32xf32>
    %232 = arith.addf %229, %231 : vector<16x32xf32>
    %c0_125 = arith.constant 0 : index
    %c0_126 = arith.constant 0 : index
    %233 = vector.load %arg21[%c0_125, %c0_126] : memref<32x128xf32, #tpu.memory_space<vmem>>, vector<32x128xf32>
    %cst_127 = arith.constant dense<0.000000e+00> : vector<16x128xf32>
    %234 = tpu.matmul %232, %233, %cst_127 {dimension_numbers = #tpu.dot_dimension_numbers<[1], [0], [0], [1], [0, 0, 1, 1], [], []>} : vector<16x32xf32>, vector<32x128xf32>, vector<16x128xf32> -> vector<16x128xf32>
    %c0_128 = arith.constant 0 : index
    %c0_129 = arith.constant 0 : index
    %235 = vector.load %arg22[%c0_128, %c0_129] : memref<16x128xf32, #tpu.memory_space<vmem>>, vector<16x128xf32>
    tpu.vector_store %arg22[%c0_128, %c0_129], %234 {strides = array<i32>} : memref<16x128xf32, #tpu.memory_space<vmem>>, vector<16x128xf32>,
    return
  }
}

</mosaic_0001>

<llo_original>
// kernel: squeeze.17
$region0: #{squeeze.17}
  %s0 = inlined_call_operand.vmem [shape: f32[96], index: 0, kind: input, shape index: {}]
  %s1 = inlined_call_operand.vmem [shape: f32[1,4,3,8], index: 1, kind: output, shape index: {}]
  $region1: #{squeeze.17} parent=0
    #allocation0 [shape = 'u8[16384]{0}', space=vmem, size = 0x4000, scoped, tag = 'scoped mem for output reshape']
    #allocation1 [shape = 'u8[4096]{0}', space=vmem, size = 0x1000, scoped, tag = 'scoped mem for input reshape']
    %s3 = sshllo.u32 0, 1
    %v4 = vld [vmem:[%s0] sm:%s3]
    %5 = vst [vmem:[#allocation1] sm:%s3] %v4
    %v6 = vld [vmem:[#allocation1] sm:$0x1]
    %vm7 = vcmask 64512
    %8 = vst.msk [vmem:[#allocation0] sm:$0x1] %vm7, %v6
    %v9 = vld [vmem:[#allocation1] sm:$0x1]
    %10 = vrot.lane.b32.xlu0 %v9, 120
    %v11 = vpop.permute.xlu0 %10
    %vm12 = vcmask 64512
    %s13 = scalar_lea.vmem [#allocation0], 1
    %14 = vst.msk [vmem:[%s13] sm:$0x1] %vm12, %v11
    %v15 = vld [vmem:[#allocation1] sm:$0x1]
    %16 = vrot.lane.b32.xlu0 %v15, 112
    %v17 = vpop.permute.xlu0 %16
    %vm18 = vcmask 64512
    %s19 = scalar_lea.vmem [#allocation0], 2
    %20 = vst.msk [vmem:[%s19] sm:$0x1] %vm18, %v17
    %v21 = vld [vmem:[#allocation1] sm:$0x1]
    %22 = vrot.lane.b32.xlu0 %v21, 104
    %v23 = vpop.permute.xlu0 %22
    %vm24 = vcmask 64512
    %s25 = scalar_lea.vmem [#allocation0], 8
    %26 = vst.msk [vmem:[%s25] sm:$0x1] %vm24, %v23
    %v27 = vld [vmem:[#allocation1] sm:$0x1]
    %28 = vrot.lane.b32.xlu0 %v27, 96
    %v29 = vpop.permute.xlu0 %28
    %vm30 = vcmask 64512
    %s31 = scalar_lea.vmem [#allocation0], 9
    %32 = vst.msk [vmem:[%s31] sm:$0x1] %vm30, %v29
    %v33 = vld [vmem:[#allocation1] sm:$0x1]
    %34 = vrot.lane.b32.xlu0 %v33, 88
    %v35 = vpop.permute.xlu0 %34
    %vm36 = vcmask 64512
    %s37 = scalar_lea.vmem [#allocation0], 10
    %38 = vst.msk [vmem:[%s37] sm:$0x1] %vm36, %v35
    %v39 = vld [vmem:[#allocation1] sm:$0x1]
    %40 = vrot.lane.b32.xlu0 %v39, 80
    %v41 = vpop.permute.xlu0 %40
    %vm42 = vcmask 64512
    %s43 = scalar_lea.vmem [#allocation0], 16
    %44 = vst.msk [vmem:[%s43] sm:$0x1] %vm42, %v41
    %v45 = vld [vmem:[#allocation1] sm:$0x1]
    %46 = vrot.lane.b32.xlu0 %v45, 72
    %v47 = vpop.permute.xlu0 %46
    %vm48 = vcmask 64512
    %s49 = scalar_lea.vmem [#allocation0], 17
    %50 = vst.msk [vmem:[%s49] sm:$0x1] %vm48, %v47
    %v51 = vld [vmem:[#allocation1] sm:$0x1]
    %52 = vrot.lane.b32.xlu0 %v51, 64
    %v53 = vpop.permute.xlu0 %52
    %vm54 = vcmask 64512
    %s55 = scalar_lea.vmem [#allocation0], 18
    %56 = vst.msk [vmem:[%s55] sm:$0x1] %vm54, %v53
    %v57 = vld [vmem:[#allocation1] sm:$0x1]
    %58 = vrot.lane.b32.xlu0 %v57, 56
    %v59 = vpop.permute.xlu0 %58
    %vm60 = vcmask 64512
    %s61 = scalar_lea.vmem [#allocation0], 24
    %62 = vst.msk [vmem:[%s61] sm:$0x1] %vm60, %v59
    %v63 = vld [vmem:[#allocation1] sm:$0x1]
    %64 = vrot.lane.b32.xlu0 %v63, 48
    %v65 = vpop.permute.xlu0 %64
    %vm66 = vcmask 64512
    %s67 = scalar_lea.vmem [#allocation0], 25
    %68 = vst.msk [vmem:[%s67] sm:$0x1] %vm66, %v65
    %v69 = vld [vmem:[#allocation1] sm:$0x1]
    %70 = vrot.lane.b32.xlu0 %v69, 40
    %v71 = vpop.permute.xlu0 %70
    %vm72 = vcmask 64512
    %s73 = scalar_lea.vmem [#allocation0], 26
    %74 = vst.msk [vmem:[%s73] sm:$0x1] %vm72, %v71
    %s76 = sshllo.u32 0, 4
    %v78 = vld [vmem:[#allocation0] sm:%s76]
    %s79 = sshllo.u32 0, 4
    %80 = vst [vmem:[%s1] sm:%s79] %v78
    %s81 = scalar_lea.vmem [#allocation0], 8
    %v82 = vld [vmem:[%s81] sm:%s76]
    %s83 = sshllo.u32 0, 4
    %s84 = scalar_lea.vmem %s1, 4
    %85 = vst [vmem:[%s84] sm:%s83] %v82
    %s86 = scalar_lea.vmem [#allocation0], 16
    %v87 = vld [vmem:[%s86] sm:%s76]
    %s88 = sshllo.u32 0, 4
    %s89 = smul.addr 4, 2
    %s90 = scalar_lea.vmem %s1, %s89
    %91 = vst [vmem:[%s90] sm:%s88] %v87
    %s92 = scalar_lea.vmem [#allocation0], 24
    %v93 = vld [vmem:[%s92] sm:%s76]
    %s94 = sshllo.u32 0, 4
    %s95 = smul.addr 4, 3
    %s96 = scalar_lea.vmem %s1, %s95
    %97 = vst [vmem:[%s96] sm:%s94] %v93

// kernel: squeeze.31
$region0: #{squeeze.31}
  %s0 = inlined_call_operand.vmem [shape: f32[4,8], index: 0, kind: input, shape index: {}]
  %s1 = inlined_call_operand.vmem [shape: f32[1,32], index: 1, kind: output, shape index: {}]
  $region1: #{squeeze.31} parent=0
    #allocation0 [shape = 'u8[4096]{0}', space=vmem, size = 0x1000, scoped, tag = 'scoped mem for output reshape']
    #allocation1 [shape = 'u8[4096]{0}', space=vmem, size = 0x1000, scoped, tag = 'scoped mem for input reshape']
    %s3 = sshllo.u32 0, 4
    %v4 = vld [vmem:[%s0] sm:%s3]
    %5 = vst [vmem:[#allocation1] sm:%s3] %v4
    %v6 = vld [vmem:[#allocation1] sm:$0x1]
    %vm7 = vcmask 64512
    %8 = vst.msk [vmem:[#allocation0] sm:$0x1] %vm7, %v6
    %s9 = scalar_lea.vmem [#allocation1], 3
    %v10 = vld [vmem:[%s9] sm:$0x1]
    %11 = vrot.lane.b32.xlu0 %v10, 24
    %v12 = vpop.permute.xlu0 %11
    %vm13 = vcmask 261312
    %14 = vst.msk [vmem:[#allocation0] sm:$0x1] %vm13, %v12
    %s15 = scalar_lea.vmem [#allocation1], 2
    %v16 = vld [vmem:[%s15] sm:$0x1]
    %17 = vrot.lane.b32.xlu0 %v16, 16
    %v18 = vpop.permute.xlu0 %17
    %vm19 = vcmask 195712
    %20 = vst.msk [vmem:[#allocation0] sm:$0x1] %vm19, %v18
    %s21 = scalar_lea.vmem [#allocation1], 1
    %v22 = vld [vmem:[%s21] sm:$0x1]
    %23 = vrot.lane.b32.xlu0 %v22, 8
    %v24 = vpop.permute.xlu0 %23
    %vm25 = vcmask 130112
    %26 = vst.msk [vmem:[#allocation0] sm:$0x1] %vm25, %v24
    %s28 = sshllo.u32 0, 1
    %v30 = vld [vmem:[#allocation0] sm:%s28]
    %s31 = sshllo.u32 0, 1
    %32 = vst [vmem:[%s1] sm:%s31] %v30

// kernel: tile.29
$region0: #{tile.29}
  %s0 = inlined_call_operand.vmem [shape: f32[16,4,16], index: 0, kind: input, shape index: {}]
  %s1 = inlined_call_operand.vmem [shape: f32[16,64], index: 1, kind: output, shape index: {}]
  $region1: #{tile.29} parent=0
    #allocation0 [shape = 'u8[65536]{0}', space=vmem, size = 0x10000, scoped, tag = 'scoped mem for input reshape']
    %s3 = sshllo.u32 0, 4
    %s4 = smul.addr 4, 15
    %s5 = scalar_lea.vmem %s0, %s4
    %v6 = vld [vmem:[%s5] sm:%s3]
    %s7 = scalar_lea.vmem [#allocation0], 120
    %8 = vst [vmem:[%s7] sm:%s3] %v6
    %s9 = smul.addr 4, 14
    %s10 = scalar_lea.vmem %s0, %s9
    %v11 = vld [vmem:[%s10] sm:%s3]
    %s12 = scalar_lea.vmem [#allocation0], 112
    %13 = vst [vmem:[%s12] sm:%s3] %v11
    %s14 = smul.addr 4, 13
    %s15 = scalar_lea.vmem %s0, %s14
    %v16 = vld [vmem:[%s15] sm:%s3]
    %s17 = scalar_lea.vmem [#allocation0], 104
    %18 = vst [vmem:[%s17] sm:%s3] %v16
    %s19 = smul.addr 4, 12
    %s20 = scalar_lea.vmem %s0, %s19
    %v21 = vld [vmem:[%s20] sm:%s3]
    %s22 = scalar_lea.vmem [#allocation0], 96
    %23 = vst [vmem:[%s22] sm:%s3] %v21
    %s24 = smul.addr 4, 11
    %s25 = scalar_lea.vmem %s0, %s24
    %v26 = vld [vmem:[%s25] sm:%s3]
    %s27 = scalar_lea.vmem [#allocation0], 88
    %28 = vst [vmem:[%s27] sm:%s3] %v26
    %s29 = smul.addr 4, 10
    %s30 = scalar_lea.vmem %s0, %s29
    %v31 = vld [vmem:[%s30] sm:%s3]
    %s32 = scalar_lea.vmem [#allocation0], 80
    %33 = vst [vmem:[%s32] sm:%s3] %v31
    %s34 = smul.addr 4, 9
    %s35 = scalar_lea.vmem %s0, %s34
    %v36 = vld [vmem:[%s35] sm:%s3]
    %s37 = scalar_lea.vmem [#allocation0], 72
    %38 = vst [vmem:[%s37] sm:%s3] %v36
    %s39 = smul.addr 4, 8
    %s40 = scalar_lea.vmem %s0, %s39
    %v41 = vld [vmem:[%s40] sm:%s3]
    %s42 = scalar_lea.vmem [#allocation0], 64
    %43 = vst [vmem:[%s42] sm:%s3] %v41
    %s44 = smul.addr 4, 7
    %s45 = scalar_lea.vmem %s0, %s44
    %v46 = vld [vmem:[%s45] sm:%s3]
    %s47 = scalar_lea.vmem [#allocation0], 56
    %48 = vst [vmem:[%s47] sm:%s3] %v46
    %s49 = smul.addr 4, 6
    %s50 = scalar_lea.vmem %s0, %s49
    %v51 = vld [vmem:[%s50] sm:%s3]
    %s52 = scalar_lea.vmem [#allocation0], 48
    %53 = vst [vmem:[%s52] sm:%s3] %v51
    %s54 = smul.addr 4, 5
    %s55 = scalar_lea.vmem %s0, %s54
    %v56 = vld [vmem:[%s55] sm:%s3]
    %s57 = scalar_lea.vmem [#allocation0], 40
    %58 = vst [vmem:[%s57] sm:%s3] %v56
    %s59 = smul.addr 4, 4
    %s60 = scalar_lea.vmem %s0, %s59
    %v61 = vld [vmem:[%s60] sm:%s3]
    %s62 = scalar_lea.vmem [#allocation0], 32
    %63 = vst [vmem:[%s62] sm:%s3] %v61
    %s64 = smul.addr 4, 3
    %s65 = scalar_lea.vmem %s0, %s64
    %v66 = vld [vmem:[%s65] sm:%s3]
    %s67 = scalar_lea.vmem [#allocation0], 24
    %68 = vst [vmem:[%s67] sm:%s3] %v66
    %s69 = smul.addr 4, 2
    %s70 = scalar_lea.vmem %s0, %s69
    %v71 = vld [vmem:[%s70] sm:%s3]
    %s72 = scalar_lea.vmem [#allocation0], 16
    %73 = vst [vmem:[%s72] sm:%s3] %v71
    %s74 = scalar_lea.vmem %s0, 4
    %v75 = vld [vmem:[%s74] sm:%s3]
    %s76 = scalar_lea.vmem [#allocation0], 8
    %77 = vst [vmem:[%s76] sm:%s3] %v75
    %v78 = vld [vmem:[%s0] sm:%s3]
    %79 = vst [vmem:[#allocation0] sm:%s3] %v78
    %v80 = vld [vmem:[#allocation0] ss:$8 sm:$0xf]
    %v81 = vld [vmem:[#allocation0] ss:$8 sm:$0xf0]
    %vm82 = vcmask 1047556
    %v83 = vsel %vm82, %v81, %v80
    %vm84 = vcmask 130048
    %85 = vst.msk [vmem:[%s1] sm:$0xff] %vm84, %v83
    %s86 = scalar_lea.vmem [#allocation0], 64
    %v87 = vld [vmem:[%s86] ss:$8 sm:$0xf]
    %s88 = scalar_lea.vmem [#allocation0], 64
    %v89 = vld [vmem:[%s88] ss:$8 sm:$0xf0]
    %vm90 = vcmask 1047556
    %v91 = vsel %vm90, %v89, %v87
    %vm92 = vcmask 130048
    %s93 = scalar_lea.vmem %s1, 8
    %94 = vst.msk [vmem:[%s93] sm:$0xff] %vm92, %v91
    %s95 = scalar_lea.vmem [#allocation0], 3
    %v96 = vld [vmem:[%s95] ss:$8 sm:$0xf]
    %s97 = scalar_lea.vmem [#allocation0], 3
    %v98 = vld [vmem:[%s97] ss:$8 sm:$0xf0]
    %vm99 = vcmask 1047556
    %v100 = vsel %vm99, %v98, %v96
    %101 = vrot.lane.b32.xlu0 %v100, 48
    %v102 = vpop.permute.xlu0 %101
    %vm103 = vcmask 523648
    %104 = vst.msk [vmem:[%s1] sm:$0xff] %vm103, %v102
    %s105 = scalar_lea.vmem [#allocation0], 67
    %v106 = vld [vmem:[%s105] ss:$8 sm:$0xf]
    %s107 = scalar_lea.vmem [#allocation0], 67
    %v108 = vld [vmem:[%s107] ss:$8 sm:$0xf0]
    %vm109 = vcmask 1047556
    %v110 = vsel %vm109, %v108, %v106
    %111 = vrot.lane.b32.xlu0 %v110, 48
    %v112 = vpop.permute.xlu0 %111
    %vm113 = vcmask 523648
    %s114 = scalar_lea.vmem %s1, 8
    %115 = vst.msk [vmem:[%s114] sm:$0xff] %vm113, %v112
    %s116 = scalar_lea.vmem [#allocation0], 2
    %v117 = vld [vmem:[%s116] ss:$8 sm:$0xf]
    %s118 = scalar_lea.vmem [#allocation0], 2
    %v119 = vld [vmem:[%s118] ss:$8 sm:$0xf0]
    %vm120 = vcmask 1047556
    %v121 = vsel %vm120, %v119, %v117
    %122 = vrot.lane.b32.xlu0 %v121, 32
    %v123 = vpop.permute.xlu0 %122
    %vm124 = vcmask 392448
    %125 = vst.msk [vmem:[%s1] sm:$0xff] %vm124, %v123
    %s126 = scalar_lea.vmem [#allocation0], 66
    %v127 = vld [vmem:[%s126] ss:$8 sm:$0xf]
    %s128 = scalar_lea.vmem [#allocation0], 66
    %v129 = vld [vmem:[%s128] ss:$8 sm:$0xf0]
    %vm130 = vcmask 1047556
    %v131 = vsel %vm130, %v129, %v127
    %132 = vrot.lane.b32.xlu0 %v131, 32
    %v133 = vpop.permute.xlu0 %132
    %vm134 = vcmask 392448
    %s135 = scalar_lea.vmem %s1, 8
    %136 = vst.msk [vmem:[%s135] sm:$0xff] %vm134, %v133
    %s137 = scalar_lea.vmem [#allocation0], 1
    %v138 = vld [vmem:[%s137] ss:$8 sm:$0xf]
    %s139 = scalar_lea.vmem [#allocation0], 1
    %v140 = vld [vmem:[%s139] ss:$8 sm:$0xf0]
    %vm141 = vcmask 1047556
    %v142 = vsel %vm141, %v140, %v138
    %143 = vrot.lane.b32.xlu0 %v142, 16
    %v144 = vpop.permute.xlu0 %143
    %vm145 = vcmask 261248
    %146 = vst.msk [vmem:[%s1] sm:$0xff] %vm145, %v144
    %s147 = scalar_lea.vmem [#allocation0], 65
    %v148 = vld [vmem:[%s147] ss:$8 sm:$0xf]
    %s149 = scalar_lea.vmem [#allocation0], 65
    %v150 = vld [vmem:[%s149] ss:$8 sm:$0xf0]
    %vm151 = vcmask 1047556
    %v152 = vsel %vm151, %v150, %v148
    %153 = vrot.lane.b32.xlu0 %v152, 16
    %v154 = vpop.permute.xlu0 %153
    %vm155 = vcmask 261248
    %s156 = scalar_lea.vmem %s1, 8
    %157 = vst.msk [vmem:[%s156] sm:$0xff] %vm155, %v154

// kernel: tile.18
$region0: #{tile.18}
  #allocation0 [shape = 's32[1]{0}', space=sflag, size = 0x4, scoped, tag = 'scoped memory for tile.18']
  %s0 = inlined_call_operand.vmem [shape: f32[8,8], index: 0, kind: input, shape index: {}]
  %s1 = inlined_call_operand.vmem [shape: f32[2,8,4,8], index: 1, kind: output, shape index: {}]
  // Predicated region
  $region2: #{tile.18} parent=0 // pred_check
    _
  $region3: #{tile.18} parent=0 // pred_check_branch
    %3 = sbr.rel (0) target = $region5
  $region4: #{tile.18} parent=0 // pred_region
    _
  $region5: #{tile.18} parent=0 // pred_fallthru
    _
  %v4 = vld [vmem:[%s0] ss:$0 sm:$0xff]
  %5 = vst [vmem:[%s1] sm:$0xf] %v4
  %s6 = scalar_lea.vmem %s1, 32
  %7 = vst [vmem:[%s6] sm:$0xf] %v4
  %s8 = scalar_lea.vmem %s0, 1
  %v9 = vld [vmem:[%s8] ss:$0 sm:$0xff]
  %s10 = scalar_lea.vmem %s1, 4
  %11 = vst [vmem:[%s10] sm:$0xf] %v9
  %s12 = scalar_lea.vmem %s1, 36
  %13 = vst [vmem:[%s12] sm:$0xf] %v9
  %s14 = scalar_lea.vmem %s0, 2
  %v15 = vld [vmem:[%s14] ss:$0 sm:$0xff]
  %s16 = scalar_lea.vmem %s1, 8
  %17 = vst [vmem:[%s16] sm:$0xf] %v15
  %s18 = scalar_lea.vmem %s1, 40
  %19 = vst [vmem:[%s18] sm:$0xf] %v15
  %s20 = scalar_lea.vmem %s0, 3
  %v21 = vld [vmem:[%s20] ss:$0 sm:$0xff]
  %s22 = scalar_lea.vmem %s1, 12
  %23 = vst [vmem:[%s22] sm:$0xf] %v21
  %s24 = scalar_lea.vmem %s1, 44
  %25 = vst [vmem:[%s24] sm:$0xf] %v21
  %s26 = scalar_lea.vmem %s0, 4
  %v27 = vld [vmem:[%s26] ss:$0 sm:$0xff]
  %s28 = scalar_lea.vmem %s1, 16
  %29 = vst [vmem:[%s28] sm:$0xf] %v27
  %s30 = scalar_lea.vmem %s1, 48
  %31 = vst [vmem:[%s30] sm:$0xf] %v27
  %s32 = scalar_lea.vmem %s0, 5
  %v33 = vld [vmem:[%s32] ss:$0 sm:$0xff]
  %s34 = scalar_lea.vmem %s1, 20
  %35 = vst [vmem:[%s34] sm:$0xf] %v33
  %s36 = scalar_lea.vmem %s1, 52
  %37 = vst [vmem:[%s36] sm:$0xf] %v33
  %s38 = scalar_lea.vmem %s0, 6
  %v39 = vld [vmem:[%s38] ss:$0 sm:$0xff]
  %s40 = scalar_lea.vmem %s1, 24
  %41 = vst [vmem:[%s40] sm:$0xf] %v39
  %s42 = scalar_lea.vmem %s1, 56
  %43 = vst [vmem:[%s42] sm:$0xf] %v39
  %s44 = scalar_lea.vmem %s0, 7
  %v45 = vld [vmem:[%s44] ss:$0 sm:$0xff]
  %s46 = scalar_lea.vmem %s1, 28
  %47 = vst [vmem:[%s46] sm:$0xf] %v45
  %s48 = scalar_lea.vmem %s1, 60
  %49 = vst [vmem:[%s48] sm:$0xf] %v45

// kernel: tile.19
$region0: #{tile.19}
  %s0 = inlined_call_operand.vmem [shape: f32[2,8,4,8], index: 0, kind: input, shape index: {}]
  %s1 = inlined_call_operand.vmem [shape: f32[16,32], index: 1, kind: output, shape index: {}]
  $region1: #{tile.19} parent=0
    #allocation0 [shape = 'u8[65536]{0}', space=vmem, size = 0x10000, scoped, tag = 'scoped mem for input reshape']
    %s3 = sshllo.u32 0, 4
    %s4 = smul.addr 4, 15
    %s5 = scalar_lea.vmem %s0, %s4
    %v6 = vld [vmem:[%s5] sm:%s3]
    %s7 = scalar_lea.vmem [#allocation0], 120
    %8 = vst [vmem:[%s7] sm:%s3] %v6
    %s9 = smul.addr 4, 14
    %s10 = scalar_lea.vmem %s0, %s9
    %v11 = vld [vmem:[%s10] sm:%s3]
    %s12 = scalar_lea.vmem [#allocation0], 112
    %13 = vst [vmem:[%s12] sm:%s3] %v11
    %s14 = smul.addr 4, 13
    %s15 = scalar_lea.vmem %s0, %s14
    %v16 = vld [vmem:[%s15] sm:%s3]
    %s17 = scalar_lea.vmem [#allocation0], 104
    %18 = vst [vmem:[%s17] sm:%s3] %v16
    %s19 = smul.addr 4, 12
    %s20 = scalar_lea.vmem %s0, %s19
    %v21 = vld [vmem:[%s20] sm:%s3]
    %s22 = scalar_lea.vmem [#allocation0], 96
    %23 = vst [vmem:[%s22] sm:%s3] %v21
    %s24 = smul.addr 4, 11
    %s25 = scalar_lea.vmem %s0, %s24
    %v26 = vld [vmem:[%s25] sm:%s3]
    %s27 = scalar_lea.vmem [#allocation0], 88
    %28 = vst [vmem:[%s27] sm:%s3] %v26
    %s29 = smul.addr 4, 10
    %s30 = scalar_lea.vmem %s0, %s29
    %v31 = vld [vmem:[%s30] sm:%s3]
    %s32 = scalar_lea.vmem [#allocation0], 80
    %33 = vst [vmem:[%s32] sm:%s3] %v31
    %s34 = smul.addr 4, 9
    %s35 = scalar_lea.vmem %s0, %s34
    %v36 = vld [vmem:[%s35] sm:%s3]
    %s37 = scalar_lea.vmem [#allocation0], 72
    %38 = vst [vmem:[%s37] sm:%s3] %v36
    %s39 = smul.addr 4, 8
    %s40 = scalar_lea.vmem %s0, %s39
    %v41 = vld [vmem:[%s40] sm:%s3]
    %s42 = scalar_lea.vmem [#allocation0], 64
    %43 = vst [vmem:[%s42] sm:%s3] %v41
    %s44 = smul.addr 4, 7
    %s45 = scalar_lea.vmem %s0, %s44
    %v46 = vld [vmem:[%s45] sm:%s3]
    %s47 = scalar_lea.vmem [#allocation0], 56
    %48 = vst [vmem:[%s47] sm:%s3] %v46
    %s49 = smul.addr 4, 6
    %s50 = scalar_lea.vmem %s0, %s49
    %v51 = vld [vmem:[%s50] sm:%s3]
    %s52 = scalar_lea.vmem [#allocation0], 48
    %53 = vst [vmem:[%s52] sm:%s3] %v51
    %s54 = smul.addr 4, 5
    %s55 = scalar_lea.vmem %s0, %s54
    %v56 = vld [vmem:[%s55] sm:%s3]
    %s57 = scalar_lea.vmem [#allocation0], 40
    %58 = vst [vmem:[%s57] sm:%s3] %v56
    %s59 = smul.addr 4, 4
    %s60 = scalar_lea.vmem %s0, %s59
    %v61 = vld [vmem:[%s60] sm:%s3]
    %s62 = scalar_lea.vmem [#allocation0], 32
    %63 = vst [vmem:[%s62] sm:%s3] %v61
    %s64 = smul.addr 4, 3
    %s65 = scalar_lea.vmem %s0, %s64
    %v66 = vld [vmem:[%s65] sm:%s3]
    %s67 = scalar_lea.vmem [#allocation0], 24
    %68 = vst [vmem:[%s67] sm:%s3] %v66
    %s69 = smul.addr 4, 2
    %s70 = scalar_lea.vmem %s0, %s69
    %v71 = vld [vmem:[%s70] sm:%s3]
    %s72 = scalar_lea.vmem [#allocation0], 16
    %73 = vst [vmem:[%s72] sm:%s3] %v71
    %s74 = scalar_lea.vmem %s0, 4
    %v75 = vld [vmem:[%s74] sm:%s3]
    %s76 = scalar_lea.vmem [#allocation0], 8
    %77 = vst [vmem:[%s76] sm:%s3] %v75
    %v78 = vld [vmem:[%s0] sm:%s3]
    %79 = vst [vmem:[#allocation0] sm:%s3] %v78
    %v80 = vld [vmem:[#allocation0] ss:$8 sm:$0xf]
    %v81 = vld [vmem:[#allocation0] ss:$8 sm:$0xf0]
    %vm82 = vcmask 1047556
    %v83 = vsel %vm82, %v81, %v80
    %vm84 = vcmask 64512
    %85 = vst.msk [vmem:[%s1] sm:$0xff] %vm84, %v83
    %s86 = scalar_lea.vmem [#allocation0], 64
    %v87 = vld [vmem:[%s86] ss:$8 sm:$0xf]
    %s88 = scalar_lea.vmem [#allocation0], 64
    %v89 = vld [vmem:[%s88] ss:$8 sm:$0xf0]
    %vm90 = vcmask 1047556
    %v91 = vsel %vm90, %v89, %v87
    %vm92 = vcmask 64512
    %s93 = scalar_lea.vmem %s1, 8
    %94 = vst.msk [vmem:[%s93] sm:$0xff] %vm92, %v91
    %s95 = scalar_lea.vmem [#allocation0], 3
    %v96 = vld [vmem:[%s95] ss:$8 sm:$0xf]
    %s97 = scalar_lea.vmem [#allocation0], 3
    %v98 = vld [vmem:[%s97] ss:$8 sm:$0xf0]
    %vm99 = vcmask 1047556
    %v100 = vsel %vm99, %v98, %v96
    %101 = vrot.lane.b32.xlu0 %v100, 24
    %v102 = vpop.permute.xlu0 %101
    %vm103 = vcmask 261312
    %104 = vst.msk [vmem:[%s1] sm:$0xff] %vm103, %v102
    %s105 = scalar_lea.vmem [#allocation0], 67
    %v106 = vld [vmem:[%s105] ss:$8 sm:$0xf]
    %s107 = scalar_lea.vmem [#allocation0], 67
    %v108 = vld [vmem:[%s107] ss:$8 sm:$0xf0]
    %vm109 = vcmask 1047556
    %v110 = vsel %vm109, %v108, %v106
    %111 = vrot.lane.b32.xlu0 %v110, 24
    %v112 = vpop.permute.xlu0 %111
    %vm113 = vcmask 261312
    %s114 = scalar_lea.vmem %s1, 8
    %115 = vst.msk [vmem:[%s114] sm:$0xff] %vm113, %v112
    %s116 = scalar_lea.vmem [#allocation0], 2
    %v117 = vld [vmem:[%s116] ss:$8 sm:$0xf]
    %s118 = scalar_lea.vmem [#allocation0], 2
    %v119 = vld [vmem:[%s118] ss:$8 sm:$0xf0]
    %vm120 = vcmask 1047556
    %v121 = vsel %vm120, %v119, %v117
    %122 = vrot.lane.b32.xlu0 %v121, 16
    %v123 = vpop.permute.xlu0 %122
    %vm124 = vcmask 195712
    %125 = vst.msk [vmem:[%s1] sm:$0xff] %vm124, %v123
    %s126 = scalar_lea.vmem [#allocation0], 66
    %v127 = vld [vmem:[%s126] ss:$8 sm:$0xf]
    %s128 = scalar_lea.vmem [#allocation0], 66
    %v129 = vld [vmem:[%s128] ss:$8 sm:$0xf0]
    %vm130 = vcmask 1047556
    %v131 = vsel %vm130, %v129, %v127
    %132 = vrot.lane.b32.xlu0 %v131, 16
    %v133 = vpop.permute.xlu0 %132
    %vm134 = vcmask 195712
    %s135 = scalar_lea.vmem %s1, 8
    %136 = vst.msk [vmem:[%s135] sm:$0xff] %vm134, %v133
    %s137 = scalar_lea.vmem [#allocation0], 1
    %v138 = vld [vmem:[%s137] ss:$8 sm:$0xf]
    %s139 = scalar_lea.vmem [#allocation0], 1
    %v140 = vld [vmem:[%s139] ss:$8 sm:$0xf0]
    %vm141 = vcmask 1047556
    %v142 = vsel %vm141, %v140, %v138
    %143 = vrot.lane.b32.xlu0 %v142, 8
    %v144 = vpop.permute.xlu0 %143
    %vm145 = vcmask 130112
    %146 = vst.msk [vmem:[%s1] sm:$0xff] %vm145, %v144
    %s147 = scalar_lea.vmem [#allocation0], 65
    %v148 = vld [vmem:[%s147] ss:$8 sm:$0xf]
    %s149 = scalar_lea.vmem [#allocation0], 65
    %v150 = vld [vmem:[%s149] ss:$8 sm:$0xf0]
    %vm151 = vcmask 1047556
    %v152 = vsel %vm151, %v150, %v148
    %153 = vrot.lane.b32.xlu0 %v152, 8
    %v154 = vpop.permute.xlu0 %153
    %vm155 = vcmask 130112
    %s156 = scalar_lea.vmem %s1, 8
    %157 = vst.msk [vmem:[%s156] sm:$0xff] %vm155, %v154

// kernel: gpt_neox_forward.1
$region0: #{gpt_neox_forward.1}
  #allocation0 [shape = 'u32[]', space=smem, size = 0x4, offset = 0x4, fixed_abs, tag = 'smem constant byte address 0x4 - core index']
  #allocation1 [shape = 'u32[144,128]{1,0:T(1,128)}', space=vmem, size = 0x12000, scoped, tag = 'internal scratch']
  %s0 = inlined_call_operand.vmem [shape: s32[16,1], index: 0, kind: input, shape index: {}]
  %s1 = inlined_call_operand.vmem [shape: f32[16,64], index: 1, kind: input, shape index: {}]
  %s2 = inlined_call_operand.vmem [shape: f32[16,32], index: 2, kind: input, shape index: {}]
  %s3 = inlined_call_operand.vmem [shape: f32[16,32], index: 3, kind: input, shape index: {}]
  %s4 = inlined_call_operand.vmem [shape: f32[64,32], index: 4, kind: input, shape index: {}]
  %s5 = inlined_call_operand.vmem [shape: f32[64,64], index: 5, kind: input, shape index: {}]
  %s6 = inlined_call_operand.vmem [shape: f32[64,32], index: 6, kind: input, shape index: {}]
  %s7 = inlined_call_operand.vmem [shape: f32[2,1,32], index: 7, kind: input, shape index: {}]
  %s8 = inlined_call_operand.vmem [shape: f32[2,1,32], index: 8, kind: input, shape index: {}]
  %s9 = inlined_call_operand.vmem [shape: f32[2,1,32], index: 9, kind: input, shape index: {}]
  %s10 = inlined_call_operand.vmem [shape: f32[2,1,32], index: 10, kind: input, shape index: {}]
  %s11 = inlined_call_operand.vmem [shape: f32[2,32,160], index: 11, kind: input, shape index: {}]
  %s12 = inlined_call_operand.vmem [shape: f32[2,1,160], index: 12, kind: input, shape index: {}]
  %s13 = inlined_call_operand.vmem [shape: f32[2,32,32], index: 13, kind: input, shape index: {}]
  %s14 = inlined_call_operand.vmem [shape: f32[2,1,32], index: 14, kind: input, shape index: {}]
  %s15 = inlined_call_operand.vmem [shape: f32[2,32,128], index: 15, kind: input, shape index: {}]
  %s16 = inlined_call_operand.vmem [shape: f32[2,1,128], index: 16, kind: input, shape index: {}]
  %s17 = inlined_call_operand.vmem [shape: f32[2,128,32], index: 17, kind: input, shape index: {}]
  %s18 = inlined_call_operand.vmem [shape: f32[2,1,32], index: 18, kind: input, shape index: {}]
  %s19 = inlined_call_operand.vmem [shape: f32[1,32], index: 19, kind: input, shape index: {}]
  %s20 = inlined_call_operand.vmem [shape: f32[1,32], index: 20, kind: input, shape index: {}]
  %s21 = inlined_call_operand.vmem [shape: f32[32,128], index: 21, kind: input, shape index: {}]
  %s22 = inlined_call_operand.vmem [shape: f32[16,128], index: 22, kind: output, shape index: {}]
  %s23 = sld [smem:[#allocation0]]
  $region98: #{gpt_neox_forward.1} parent=0
    _
  %s25 = ssub.s32 1, %s23
  %s26 = scalar_select 0, %s25, %s23
  // Predicated region
  $region2: #{gpt_neox_forward.1} parent=0 // pred_check
    _
  $region3: #{gpt_neox_forward.1} parent=0 // pred_check_branch
    %28 = sbr.rel (0) target = $region5
  $region4: #{gpt_neox_forward.1} parent=0 // pred_region
    _
  $region5: #{gpt_neox_forward.1} parent=0 // pred_fallthru
    _
  // Predicated region
  $region6: #{gpt_neox_forward.1} parent=0 // pred_check
    _
  $region7: #{gpt_neox_forward.1} parent=0 // pred_check_branch
    %30 = sbr.rel (0) target = $region9
  $region8: #{gpt_neox_forward.1} parent=0 // pred_region
    _
  $region9: #{gpt_neox_forward.1} parent=0 // pred_fallthru
    _
  // Predicated region
  $region10: #{gpt_neox_forward.1} parent=0 // pred_check
    _
  $region11: #{gpt_neox_forward.1} parent=0 // pred_check_branch
    %32 = sbr.rel (0) target = $region13
  $region12: #{gpt_neox_forward.1} parent=0 // pred_region
    _
  $region13: #{gpt_neox_forward.1} parent=0 // pred_fallthru
    _
  // Predicated region
  $region14: #{gpt_neox_forward.1} parent=0 // pred_check
    _
  $region15: #{gpt_neox_forward.1} parent=0 // pred_check_branch
    %34 = sbr.rel (0) target = $region17
  $region16: #{gpt_neox_forward.1} parent=0 // pred_region
    _
  $region17: #{gpt_neox_forward.1} parent=0 // pred_fallthru
    _
  // Predicated region
  $region18: #{gpt_neox_forward.1} parent=0 // pred_check
    _
  $region19: #{gpt_neox_forward.1} parent=0 // pred_check_branch
    %36 = sbr.rel (0) target = $region21
  $region20: #{gpt_neox_forward.1} parent=0 // pred_region
    _
  $region21: #{gpt_neox_forward.1} parent=0 // pred_fallthru
    _
  // Predicated region
  $region22: #{gpt_neox_forward.1} parent=0 // pred_check
    _
  $region23: #{gpt_neox_forward.1} parent=0 // pred_check_branch
    %38 = sbr.rel (0) target = $region25
  $region24: #{gpt_neox_forward.1} parent=0 // pred_region
    _
  $region25: #{gpt_neox_forward.1} parent=0 // pred_fallthru
    _
  // Predicated region
  $region26: #{gpt_neox_forward.1} parent=0 // pred_check
    _
  $region27: #{gpt_neox_forward.1} parent=0 // pred_check_branch
    %40 = sbr.rel (0) target = $region29
  $region28: #{gpt_neox_forward.1} parent=0 // pred_region
    _
  $region29: #{gpt_neox_forward.1} parent=0 // pred_fallthru
    _
  // Predicated region
  $region30: #{gpt_neox_forward.1} parent=0 // pred_check
    _
  $region31: #{gpt_neox_forward.1} parent=0 // pred_check_branch
    %42 = sbr.rel (0) target = $region33
  $region32: #{gpt_neox_forward.1} parent=0 // pred_region
    _
  $region33: #{gpt_neox_forward.1} parent=0 // pred_fallthru
    _
  // Predicated region
  $region34: #{gpt_neox_forward.1} parent=0 // pred_check
    _
  $region35: #{gpt_neox_forward.1} parent=0 // pred_check_branch
    %44 = sbr.rel (0) target = $region37
  $region36: #{gpt_neox_forward.1} parent=0 // pred_region
    _
  $region37: #{gpt_neox_forward.1} parent=0 // pred_fallthru
    _
  // Predicated region
  $region38: #{gpt_neox_forward.1} parent=0 // pred_check
    _
  $region39: #{gpt_neox_forward.1} parent=0 // pred_check_branch
    %46 = sbr.rel (0) target = $region41
  $region40: #{gpt_neox_forward.1} parent=0 // pred_region
    _
  $region41: #{gpt_neox_forward.1} parent=0 // pred_fallthru
    _
  // Predicated region
  $region42: #{gpt_neox_forward.1} parent=0 // pred_check
    _
  $region43: #{gpt_neox_forward.1} parent=0 // pred_check_branch
    %48 = sbr.rel (0) target = $region45
  $region44: #{gpt_neox_forward.1} parent=0 // pred_region
    _
  $region45: #{gpt_neox_forward.1} parent=0 // pred_fallthru
    _
  // Predicated region
  $region46: #{gpt_neox_forward.1} parent=0 // pred_check
    _
  $region47: #{gpt_neox_forward.1} parent=0 // pred_check_branch
    %50 = sbr.rel (0) target = $region49
  $region48: #{gpt_neox_forward.1} parent=0 // pred_region
    _
  $region49: #{gpt_neox_forward.1} parent=0 // pred_fallthru
    _
  // Predicated region
  $region50: #{gpt_neox_forward.1} parent=0 // pred_check
    _
  $region51: #{gpt_neox_forward.1} parent=0 // pred_check_branch
    %52 = sbr.rel (0) target = $region53
  $region52: #{gpt_neox_forward.1} parent=0 // pred_region
    _
  $region53: #{gpt_neox_forward.1} parent=0 // pred_fallthru
    _
  // Predicated region
  $region54: #{gpt_neox_forward.1} parent=0 // pred_check
    _
  $region55: #{gpt_neox_forward.1} parent=0 // pred_check_branch
    %54 = sbr.rel (0) target = $region57
  $region56: #{gpt_neox_forward.1} parent=0 // pred_region
    _
  $region57: #{gpt_neox_forward.1} parent=0 // pred_fallthru
    _
  // Predicated region
  $region58: #{gpt_neox_forward.1} parent=0 // pred_check
    _
  $region59: #{gpt_neox_forward.1} parent=0 // pred_check_branch
    %56 = sbr.rel (0) target = $region61
  $region60: #{gpt_neox_forward.1} parent=0 // pred_region
    _
  $region61: #{gpt_neox_forward.1} parent=0 // pred_fallthru
    _
  // Predicated region
  $region62: #{gpt_neox_forward.1} parent=0 // pred_check
    _
  $region63: #{gpt_neox_forward.1} parent=0 // pred_check_branch
    %58 = sbr.rel (0) target = $region65
  $region64: #{gpt_neox_forward.1} parent=0 // pred_region
    _
  $region65: #{gpt_neox_forward.1} parent=0 // pred_fallthru
    _
  // Predicated region
  $region66: #{gpt_neox_forward.1} parent=0 // pred_check
    _
  $region67: #{gpt_neox_forward.1} parent=0 // pred_check_branch
    %60 = sbr.rel (0) target = $region69
  $region68: #{gpt_neox_forward.1} parent=0 // pred_region
    _
  $region69: #{gpt_neox_forward.1} parent=0 // pred_fallthru
    _
  // Predicated region
  $region70: #{gpt_neox_forward.1} parent=0 // pred_check
    _
  $region71: #{gpt_neox_forward.1} parent=0 // pred_check_branch
    %62 = sbr.rel (0) target = $region73
  $region72: #{gpt_neox_forward.1} parent=0 // pred_region
    _
  $region73: #{gpt_neox_forward.1} parent=0 // pred_fallthru
    _
  // Predicated region
  $region74: #{gpt_neox_forward.1} parent=0 // pred_check
    _
  $region75: #{gpt_neox_forward.1} parent=0 // pred_check_branch
    %64 = sbr.rel (0) target = $region77
  $region76: #{gpt_neox_forward.1} parent=0 // pred_region
    _
  $region77: #{gpt_neox_forward.1} parent=0 // pred_fallthru
    _
  // Predicated region
  $region78: #{gpt_neox_forward.1} parent=0 // pred_check
    _
  $region79: #{gpt_neox_forward.1} parent=0 // pred_check_branch
    %66 = sbr.rel (0) target = $region81
  $region80: #{gpt_neox_forward.1} parent=0 // pred_region
    _
  $region81: #{gpt_neox_forward.1} parent=0 // pred_fallthru
    _
  // Predicated region
  $region82: #{gpt_neox_forward.1} parent=0 // pred_check
    _
  $region83: #{gpt_neox_forward.1} parent=0 // pred_check_branch
    %68 = sbr.rel (0) target = $region85
  $region84: #{gpt_neox_forward.1} parent=0 // pred_region
    _
  $region85: #{gpt_neox_forward.1} parent=0 // pred_fallthru
    _
  // Predicated region
  $region86: #{gpt_neox_forward.1} parent=0 // pred_check
    _
  $region87: #{gpt_neox_forward.1} parent=0 // pred_check_branch
    %70 = sbr.rel (0) target = $region89
  $region88: #{gpt_neox_forward.1} parent=0 // pred_region
    _
  $region89: #{gpt_neox_forward.1} parent=0 // pred_fallthru
    _
  %v71 = vld [vmem:[%s0] sm:$0xff]
  %v72 = vld [vmem:[%s0 + $0x8] sm:$0xff]
  %v73 = vlaneseq
  %v74 = vand.u32 %v73, 127
  %75 = vset.pattern.permute.xlu0 0
  %76 = vperm.xlu0 %75, %v71
  %v77 = vpop.permute.xlu0 %76
  %78 = vset.pattern.permute.xlu0 0
  %79 = vperm.xlu0 %78, %v72
  %v80 = vpop.permute.xlu0 %79
  %vm81 = vcmp.eq.s32.totalorder %v74, %v77
  %vm82 = vcmp.eq.s32.totalorder %v74, %v80
  %v83 = vsel %vm81, 1, 0
  %v84 = vsel %vm82, 1, 0
  %v85 = vcvt.s32.f32 %v83
  %v86 = vcvt.s32.f32 %v84
  %v87 = vld [vmem:[%s6] sm:$0xff]
  %v88 = vld [vmem:[%s6 + $0x8] sm:$0xff]
  %v89 = vld [vmem:[%s6 + $0x10] sm:$0xff]
  %v90 = vld [vmem:[%s6 + $0x18] sm:$0xff]
  %v91 = vld [vmem:[%s6 + $0x20] sm:$0xff]
  %v92 = vld [vmem:[%s6 + $0x28] sm:$0xff]
  %v93 = vld [vmem:[%s6 + $0x30] sm:$0xff]
  %v94 = vld [vmem:[%s6 + $0x38] sm:$0xff]
  %vm95 = vcmask 523264
  %v97 = vsel %vm95, %v85, 0
  %v100 = vsel %vm95, %v86, 0
  %102 = vmatprep.subr.mxu0 0.0
  %103 = vmatpush1.msra.mxu0 %v87
  %104 = vmatprep.subr.mxu0 0.0
  %105 = vmatpush1.msra.mxu0 %v88
  %106 = vmatprep.subr.mxu0 0.0
  %107 = vmatpush1.msra.mxu0 %v89
  %108 = vmatprep.subr.mxu0 0.0
  %109 = vmatpush1.msra.mxu0 %v90
  %110 = vmatprep.subr.mxu0 0.0
  %111 = vmatpush1.msra.mxu0 %v91
  %112 = vmatprep.subr.mxu0 0.0
  %113 = vmatpush1.msra.mxu0 %v92
  %114 = vmatprep.subr.mxu0 0.0
  %115 = vmatpush1.msra.mxu0 %v93
  %116 = vmatprep.subr.mxu0 0.0
  %117 = vmatpush1.msra.mxu0 %v94
  %118 = vmatprep.subr.mxu0 0.0
  %119 = vmatpush1.msra.mxu0 0.0
  %120 = vmatprep.subr.mxu0 0.0
  %121 = vmatpush1.msra.mxu0 0.0
  %122 = vmatprep.subr.mxu0 0.0
  %123 = vmatpush1.msra.mxu0 0.0
  %124 = vmatprep.subr.mxu0 0.0
  %125 = vmatpush1.msra.mxu0 0.0
  %126 = vmatprep.subr.mxu0 0.0
  %127 = vmatpush1.msra.mxu0 0.0
  %128 = vmatprep.subr.mxu0 0.0
  %129 = vmatpush1.msra.mxu0 0.0
  %130 = vmatprep.subr.mxu0 0.0
  %131 = vmatpush1.msra.mxu0 0.0
  %132 = vmatprep.subr.mxu0 0.0
  %133 = vmatpush1.msra.mxu0 0.0
  %134 = vmatprep.subr.mxu0 0.0
  %135 = vmatpush1.msra.mxu0 0.0
  %136 = vmatprep.subr.mxu0 0.0
  %137 = vmatpush1.msra.mxu0 0.0
  %138 = vmatprep.subr.mxu0 0.0
  %139 = vmatpush1.msra.mxu0 0.0
  %140 = vmatprep.subr.mxu0 0.0
  %141 = vmatpush1.msra.mxu0 0.0
  %142 = vmatprep.subr.mxu0 0.0
  %143 = vmatpush1.msra.mxu0 0.0
  %144 = vmatprep.subr.mxu0 0.0
  %145 = vmatpush1.msra.mxu0 0.0
  %146 = vmatprep.subr.mxu0 0.0
  %147 = vmatpush1.msra.mxu0 0.0
  %148 = vmatprep.subr.mxu0 0.0
  %149 = vmatpush1.msra.mxu0 0.0
  %150 = vmatprep.subr.mxu0 0.0
  %151 = vmatpush1.msra.mxu0 0.0
  %152 = vmatprep.subr.mxu0 0.0
  %153 = vmatpush1.msra.mxu0 0.0
  %154 = vmatprep.subr.mxu0 0.0
  %155 = vmatpush1.msra.mxu0 0.0
  %156 = vmatprep.subr.mxu0 0.0
  %157 = vmatpush1.msra.mxu0 0.0
  %158 = vmatprep.subr.mxu0 0.0
  %159 = vmatpush1.msra.mxu0 0.0
  %160 = vmatprep.subr.mxu0 0.0
  %161 = vmatpush1.msra.mxu0 0.0
  %162 = vmatprep.subr.mxu0 0.0
  %163 = vmatpush1.msra.mxu0 0.0
  %164 = vmatprep.subr.mxu0 0.0
  %165 = vmatpush1.msra.mxu0 0.0
  %166 = vmatprep.mubr.f32.mxu0 0.0
  %167 = vmatmul.mubr.f32.gmra.mrb[0].mxu0 %v97
  %v168 = vpop.f32.mrb[0].mxu0
  %v169 = vadd.f32 0.0, %v168
  %v170 = vpop.f32.mrb[0].mxu0
  %171 = vmatprep.mubr.f32.mxu0 0.0
  %172 = vmatmul.mubr.f32.gmra.mrb[0].mxu0 %v100
  %v173 = vpop.f32.mrb[0].mxu0
  %v174 = vadd.f32 0.0, %v173
  %v175 = vpop.f32.mrb[0].mxu0
  %176 = vdwg.mxu0
  %v177 = vld [vmem:[%s2] sm:$0xff]
  %v178 = vld [vmem:[%s2 + $0x8] sm:$0xff]
  %v179 = vld [vmem:[%s3] sm:$0xff]
  %v180 = vld [vmem:[%s3 + $0x8] sm:$0xff]
  %v181 = vld [vmem:[%s1] sm:$0xff]
  %v182 = vld [vmem:[%s1 + $0x8] sm:$0xff]
  %v183 = vld [vmem:[%s4] sm:$0xff]
  %v184 = vld [vmem:[%s4 + $0x8] sm:$0xff]
  %v185 = vld [vmem:[%s4 + $0x10] sm:$0xff]
  %v186 = vld [vmem:[%s4 + $0x18] sm:$0xff]
  %v187 = vld [vmem:[%s4 + $0x20] sm:$0xff]
  %v188 = vld [vmem:[%s4 + $0x28] sm:$0xff]
  %v189 = vld [vmem:[%s4 + $0x30] sm:$0xff]
  %v190 = vld [vmem:[%s4 + $0x38] sm:$0xff]
  %v191 = vld [vmem:[%s5] sm:$0xff]
  %v192 = vld [vmem:[%s5 + $0x8] sm:$0xff]
  %v193 = vld [vmem:[%s5 + $0x10] sm:$0xff]
  %v194 = vld [vmem:[%s5 + $0x18] sm:$0xff]
  %v195 = vld [vmem:[%s5 + $0x20] sm:$0xff]
  %v196 = vld [vmem:[%s5 + $0x28] sm:$0xff]
  %v197 = vld [vmem:[%s5 + $0x30] sm:$0xff]
  %v198 = vld [vmem:[%s5 + $0x38] sm:$0xff]
  %vm199 = vcmask 261120
  %v200 = vsel %vm199, %v169, 0.0
  %201 = vadd.xlane.f32.xlu0 %v200
  %v202 = vpop.xlane.xlu0 %201
  %v203 = vsel %vm199, %v174, 0.0
  %204 = vadd.xlane.f32.xlu0 %v203
  %v205 = vpop.xlane.xlu0 %204
  %v206 = vrcp.pop 32.0
  %v207 = vmul.f32 %v202, %v206
  %v208 = vmul.f32 %v205, %v206
  %v209 = vsub.f32 %v169, %v207
  %v210 = vsub.f32 %v174, %v208
  %v211 = vmul.f32 %v209, %v209
  %v212 = vmul.f32 %v210, %v210
  %v213 = vsel %vm199, %v211, 0.0
  %214 = vadd.xlane.f32.xlu0 %v213
  %v215 = vpop.xlane.xlu0 %214
  %v216 = vsel %vm199, %v212, 0.0
  %217 = vadd.xlane.f32.xlu0 %v216
  %v218 = vpop.xlane.xlu0 %217
  %v219 = vmul.f32 %v215, %v206
  %v220 = vmul.f32 %v218, %v206
  %v221 = vadd.f32 %v219, 1e-05
  %v222 = vadd.f32 %v220, 1e-05
  %v223 = vrsqrt.pop %v221
  %v224 = vrsqrt.pop %v222
  %v225 = vmul.f32 %v209, %v223
  %v226 = vmul.f32 %v210, %v224
  %v227 = vld [vmem:[%s7] sm:$0x1]
  %v229 = vlaneseq
  %v230 = vshrl.u32 %v229, 7
  %v231 = vsub.s32 0, %v230
  %v232 = vrot.slane %v227, %v231
  %v234 = vmul.f32 %v225, %v232
  %v235 = vmul.f32 %v226, %v232
  %v236 = vld [vmem:[%s8] sm:$0x1]
  %v238 = vlaneseq
  %v239 = vshrl.u32 %v238, 7
  %v240 = vsub.s32 0, %v239
  %v241 = vrot.slane %v236, %v240
  %v243 = vadd.f32 %v234, %v241
  %v244 = vadd.f32 %v235, %v241
  %v245 = vld [vmem:[%s9] sm:$0x1]
  %v247 = vlaneseq
  %v248 = vshrl.u32 %v247, 7
  %v249 = vsub.s32 0, %v248
  %v250 = vrot.slane %v245, %v249
  %v252 = vmul.f32 %v225, %v250
  %v253 = vmul.f32 %v226, %v250
  %v254 = vld [vmem:[%s10] sm:$0x1]
  %v256 = vlaneseq
  %v257 = vshrl.u32 %v256, 7
  %v258 = vsub.s32 0, %v257
  %v259 = vrot.slane %v254, %v258
  %v261 = vadd.f32 %v252, %v259
  %v262 = vadd.f32 %v253, %v259
  %v263 = vld [vmem:[%s11] sm:$0xff]
  %v264 = vld [vmem:[%s11 + $0x8] sm:$0xff]
  %v265 = vld [vmem:[%s11 + $0x10] sm:$0xff]
  %v266 = vld [vmem:[%s11 + $0x18] sm:$0xff]
  %v267 = vld [vmem:[%s11 + $0x20] sm:$0xff]
  %v268 = vld [vmem:[%s11 + $0x28] sm:$0xff]
  %v269 = vld [vmem:[%s11 + $0x30] sm:$0xff]
  %v270 = vld [vmem:[%s11 + $0x38] sm:$0xff]
  %v271 = vld [vmem:[%s12] sm:$0x3]
  %v273 = vlaneseq
  %v274 = vshrl.u32 %v273, 7
  %v275 = vsub.s32 0, %v274
  %v276 = vrot.slane %v271, %v275
  %v277 = vlaneseq
  %v278 = vshrl.u32 %v277, 7
  %v279 = vsub.s32 1, %v278
  %v280 = vrot.slane %v271, %v279
  %v284 = vsel %vm199, %v243, 0
  %v287 = vsel %vm199, %v244, 0
  %289 = vmatprep.subr.mxu0 %v264
  %290 = vmatpush1.msra.mxu0 %v263
  %291 = vmatprep.subr.mxu0 %v266
  %292 = vmatpush1.msra.mxu0 %v265
  %293 = vmatprep.subr.mxu0 %v268
  %294 = vmatpush1.msra.mxu0 %v267
  %295 = vmatprep.subr.mxu0 %v270
  %296 = vmatpush1.msra.mxu0 %v269
  %297 = vmatprep.subr.mxu0 0.0
  %298 = vmatpush1.msra.mxu0 0.0
  %299 = vmatprep.subr.mxu0 0.0
  %300 = vmatpush1.msra.mxu0 0.0
  %301 = vmatprep.subr.mxu0 0.0
  %302 = vmatpush1.msra.mxu0 0.0
  %303 = vmatprep.subr.mxu0 0.0
  %304 = vmatpush1.msra.mxu0 0.0
  %305 = vmatprep.subr.mxu0 0.0
  %306 = vmatpush1.msra.mxu0 0.0
  %307 = vmatprep.subr.mxu0 0.0
  %308 = vmatpush1.msra.mxu0 0.0
  %309 = vmatprep.subr.mxu0 0.0
  %310 = vmatpush1.msra.mxu0 0.0
  %311 = vmatprep.subr.mxu0 0.0
  %312 = vmatpush1.msra.mxu0 0.0
  %313 = vmatprep.subr.mxu0 0.0
  %314 = vmatpush1.msra.mxu0 0.0
  %315 = vmatprep.subr.mxu0 0.0
  %316 = vmatpush1.msra.mxu0 0.0
  %317 = vmatprep.subr.mxu0 0.0
  %318 = vmatpush1.msra.mxu0 0.0
  %319 = vmatprep.subr.mxu0 0.0
  %320 = vmatpush1.msra.mxu0 0.0
  %321 = vmatprep.subr.mxu0 0.0
  %322 = vmatpush1.msra.mxu0 0.0
  %323 = vmatprep.subr.mxu0 0.0
  %324 = vmatpush1.msra.mxu0 0.0
  %325 = vmatprep.subr.mxu0 0.0
  %326 = vmatpush1.msra.mxu0 0.0
  %327 = vmatprep.subr.mxu0 0.0
  %328 = vmatpush1.msra.mxu0 0.0
  %329 = vmatprep.subr.mxu0 0.0
  %330 = vmatpush1.msra.mxu0 0.0
  %331 = vmatprep.subr.mxu0 0.0
  %332 = vmatpush1.msra.mxu0 0.0
  %333 = vmatprep.subr.mxu0 0.0
  %334 = vmatpush1.msra.mxu0 0.0
  %335 = vmatprep.subr.mxu0 0.0
  %336 = vmatpush1.msra.mxu0 0.0
  %337 = vmatprep.subr.mxu0 0.0
  %338 = vmatpush1.msra.mxu0 0.0
  %339 = vmatprep.subr.mxu0 0.0
  %340 = vmatpush1.msra.mxu0 0.0
  %341 = vmatprep.subr.mxu0 0.0
  %342 = vmatpush1.msra.mxu0 0.0
  %343 = vmatprep.subr.mxu0 0.0
  %344 = vmatpush1.msra.mxu0 0.0
  %345 = vmatprep.subr.mxu0 0.0
  %346 = vmatpush1.msra.mxu0 0.0
  %347 = vmatprep.subr.mxu0 0.0
  %348 = vmatpush1.msra.mxu0 0.0
  %349 = vmatprep.subr.mxu0 0.0
  %350 = vmatpush1.msra.mxu0 0.0
  %351 = vmatprep.subr.mxu0 0.0
  %352 = vmatpush1.msra.mxu0 0.0
  %353 = vmatprep.mubr.f32.mxu0 0.0
  %354 = vmatmul.mubr.f32.gmra.mrb[0].mxu0 %v284
  %v355 = vpop.f32.mrb[0].mxu0
  %v356 = vadd.f32 %v276, %v355
  %v357 = vpop.f32.mrb[0].mxu0
  %v358 = vadd.f32 %v280, %v357
  %359 = vmatprep.mubr.f32.mxu0 0.0
  %360 = vmatmul.mubr.f32.gmra.mrb[0].mxu0 %v287
  %v361 = vpop.f32.mrb[0].mxu0
  %v362 = vadd.f32 %v276, %v361
  %v363 = vpop.f32.mrb[0].mxu0
  %v364 = vadd.f32 %v280, %v363
  %365 = vdwg.mxu0
  %v366 = vmul.f32 %v356, %v177
  %v367 = vmul.f32 %v362, %v178
  %370 = vrot.lane.b32.xlu0 %v179, 96
  %v371 = vpop.permute.xlu0 %370
  %372 = vrot.lane.b32.xlu0 %v180, 96
  %v373 = vpop.permute.xlu0 %372
  %v376 = vmul.f32 %v356, %v371
  %v377 = vmul.f32 %v362, %v373
  %380 = vrot.lane.b32.xlu0 %v376, 32
  %v381 = vpop.permute.xlu0 %380
  %382 = vrot.lane.b32.xlu0 %v377, 32
  %v383 = vpop.permute.xlu0 %382
  %v386 = vadd.f32 %v366, %v381
  %v387 = vadd.f32 %v367, %v383
  %390 = vrot.lane.b32.xlu0 %v177, 32
  %v391 = vpop.permute.xlu0 %390
  %392 = vrot.lane.b32.xlu0 %v178, 32
  %v393 = vpop.permute.xlu0 %392
  %v396 = vmul.f32 %v356, %v391
  %v397 = vmul.f32 %v362, %v393
  %v398 = vmul.f32 %v358, %v179
  %v399 = vmul.f32 %v364, %v180
  %402 = vrot.lane.b32.xlu0 %v398, 32
  %v403 = vpop.permute.xlu0 %402
  %404 = vrot.lane.b32.xlu0 %v399, 32
  %v405 = vpop.permute.xlu0 %404
  %v408 = vadd.f32 %v396, %v403
  %v409 = vadd.f32 %v397, %v405
  %418 = vrot.lane.b32.xlu0 %v183, 32
  %v419 = vpop.permute.xlu0 %418
  %420 = vrot.lane.b32.xlu0 %v184, 32
  %v421 = vpop.permute.xlu0 %420
  %422 = vrot.lane.b32.xlu0 %v185, 32
  %v423 = vpop.permute.xlu0 %422
  %424 = vrot.lane.b32.xlu0 %v186, 32
  %v425 = vpop.permute.xlu0 %424
  %426 = vrot.lane.b32.xlu0 %v187, 32
  %v427 = vpop.permute.xlu0 %426
  %428 = vrot.lane.b32.xlu0 %v188, 32
  %v429 = vpop.permute.xlu0 %428
  %430 = vrot.lane.b32.xlu0 %v189, 32
  %v431 = vpop.permute.xlu0 %430
  %432 = vrot.lane.b32.xlu0 %v190, 32
  %v433 = vpop.permute.xlu0 %432
  %v442 = vmul.f32 %v408, %v419
  %v443 = vmul.f32 %v409, %v421
  %v444 = vmul.f32 %v408, %v423
  %v445 = vmul.f32 %v409, %v425
  %v446 = vmul.f32 %v408, %v427
  %v447 = vmul.f32 %v409, %v429
  %v448 = vmul.f32 %v408, %v431
  %v449 = vmul.f32 %v409, %v433
  %450 = vrot.lane.b32.xlu0 %v183, 64
  %v451 = vpop.permute.xlu0 %450
  %452 = vrot.lane.b32.xlu0 %v184, 64
  %v453 = vpop.permute.xlu0 %452
  %454 = vrot.lane.b32.xlu0 %v185, 64
  %v455 = vpop.permute.xlu0 %454
  %456 = vrot.lane.b32.xlu0 %v186, 64
  %v457 = vpop.permute.xlu0 %456
  %458 = vrot.lane.b32.xlu0 %v187, 64
  %v459 = vpop.permute.xlu0 %458
  %460 = vrot.lane.b32.xlu0 %v188, 64
  %v461 = vpop.permute.xlu0 %460
  %462 = vrot.lane.b32.xlu0 %v189, 64
  %v463 = vpop.permute.xlu0 %462
  %464 = vrot.lane.b32.xlu0 %v190, 64
  %v465 = vpop.permute.xlu0 %464
  %v474 = vmul.f32 %v356, %v451
  %v475 = vmul.f32 %v362, %v453
  %v476 = vmul.f32 %v356, %v455
  %v477 = vmul.f32 %v362, %v457
  %v478 = vmul.f32 %v356, %v459
  %v479 = vmul.f32 %v362, %v461
  %v480 = vmul.f32 %v356, %v463
  %v481 = vmul.f32 %v362, %v465
  %490 = vrot.lane.b32.xlu0 %v442, 96
  %v491 = vpop.permute.xlu0 %490
  %492 = vrot.lane.b32.xlu0 %v443, 96
  %v493 = vpop.permute.xlu0 %492
  %494 = vrot.lane.b32.xlu0 %v444, 96
  %v495 = vpop.permute.xlu0 %494
  %496 = vrot.lane.b32.xlu0 %v445, 96
  %v497 = vpop.permute.xlu0 %496
  %498 = vrot.lane.b32.xlu0 %v446, 96
  %v499 = vpop.permute.xlu0 %498
  %500 = vrot.lane.b32.xlu0 %v447, 96
  %v501 = vpop.permute.xlu0 %500
  %502 = vrot.lane.b32.xlu0 %v448, 96
  %v503 = vpop.permute.xlu0 %502
  %504 = vrot.lane.b32.xlu0 %v449, 96
  %v505 = vpop.permute.xlu0 %504
  %v507 = vsel %vm199, %v386, 0
  %v510 = vsel %vm199, %v387, 0
  %v512 = vsel %vm199, %v491, 0
  %v514 = vsel %vm199, %v493, 0
  %v516 = vsel %vm199, %v495, 0
  %v518 = vsel %vm199, %v497, 0
  %v520 = vsel %vm199, %v499, 0
  %v522 = vsel %vm199, %v501, 0
  %v524 = vsel %vm199, %v503, 0
  %v526 = vsel %vm199, %v505, 0
  %528 = vmatprep.subr.mxu0 0.0
  %529 = vmatpush1.xpose.msra.mxu0 %v512
  %530 = vmatprep.subr.mxu0 0.0
  %531 = vmatpush1.xpose.msra.mxu0 %v514
  %532 = vmatprep.subr.mxu0 0.0
  %533 = vmatpush1.xpose.msra.mxu0 %v516
  %534 = vmatprep.subr.mxu0 0.0
  %535 = vmatpush1.xpose.msra.mxu0 %v518
  %536 = vmatprep.subr.mxu0 0.0
  %537 = vmatpush1.xpose.msra.mxu0 %v520
  %538 = vmatprep.subr.mxu0 0.0
  %539 = vmatpush1.xpose.msra.mxu0 %v522
  %540 = vmatprep.subr.mxu0 0.0
  %541 = vmatpush1.xpose.msra.mxu0 %v524
  %542 = vmatprep.subr.mxu0 0.0
  %543 = vmatpush1.xpose.msra.mxu0 %v526
  %544 = vmatprep.subr.mxu0 0.0
  %545 = vmatpush1.xpose.msra.mxu0 0.0
  %546 = vmatprep.subr.mxu0 0.0
  %547 = vmatpush1.xpose.msra.mxu0 0.0
  %548 = vmatprep.subr.mxu0 0.0
  %549 = vmatpush1.xpose.msra.mxu0 0.0
  %550 = vmatprep.subr.mxu0 0.0
  %551 = vmatpush1.xpose.msra.mxu0 0.0
  %552 = vmatprep.subr.mxu0 0.0
  %553 = vmatpush1.xpose.msra.mxu0 0.0
  %554 = vmatprep.subr.mxu0 0.0
  %555 = vmatpush1.xpose.msra.mxu0 0.0
  %556 = vmatprep.subr.mxu0 0.0
  %557 = vmatpush1.xpose.msra.mxu0 0.0
  %558 = vmatprep.subr.mxu0 0.0
  %559 = vmatpush1.xpose.msra.mxu0 0.0
  %560 = vmatprep.subr.mxu0 0.0
  %561 = vmatpush1.xpose.msra.mxu0 0.0
  %562 = vmatprep.subr.mxu0 0.0
  %563 = vmatpush1.xpose.msra.mxu0 0.0
  %564 = vmatprep.subr.mxu0 0.0
  %565 = vmatpush1.xpose.msra.mxu0 0.0
  %566 = vmatprep.subr.mxu0 0.0
  %567 = vmatpush1.xpose.msra.mxu0 0.0
  %568 = vmatprep.subr.mxu0 0.0
  %569 = vmatpush1.xpose.msra.mxu0 0.0
  %570 = vmatprep.subr.mxu0 0.0
  %571 = vmatpush1.xpose.msra.mxu0 0.0
  %572 = vmatprep.subr.mxu0 0.0
  %573 = vmatpush1.xpose.msra.mxu0 0.0
  %574 = vmatprep.subr.mxu0 0.0
  %575 = vmatpush1.xpose.msra.mxu0 0.0
  %576 = vmatprep.subr.mxu0 0.0
  %577 = vmatpush1.xpose.msra.mxu0 0.0
  %578 = vmatprep.subr.mxu0 0.0
  %579 = vmatpush1.xpose.msra.mxu0 0.0
  %580 = vmatprep.subr.mxu0 0.0
  %581 = vmatpush1.xpose.msra.mxu0 0.0
  %582 = vmatprep.subr.mxu0 0.0
  %583 = vmatpush1.xpose.msra.mxu0 0.0
  %584 = vmatprep.subr.mxu0 0.0
  %585 = vmatpush1.xpose.msra.mxu0 0.0
  %586 = vmatprep.subr.mxu0 0.0
  %587 = vmatpush1.xpose.msra.mxu0 0.0
  %588 = vmatprep.subr.mxu0 0.0
  %589 = vmatpush1.xpose.msra.mxu0 0.0
  %590 = vmatprep.subr.mxu0 0.0
  %591 = vmatpush1.xpose.msra.mxu0 0.0
  %592 = vmatprep.mubr.f32.mxu0 0.0
  %593 = vmatmul.mubr.f32.gmra.mrb[0].mxu0 %v507
  %v594 = vpop.f32.mrb[0].mxu0
  %v595 = vadd.f32 %v181, %v594
  %v596 = vpop.f32.mrb[0].mxu0
  %597 = vmatprep.mubr.f32.mxu0 0.0
  %598 = vmatmul.mubr.f32.gmra.mrb[0].mxu0 %v510
  %v599 = vpop.f32.mrb[0].mxu0
  %v600 = vadd.f32 %v182, %v599
  %v601 = vpop.f32.mrb[0].mxu0
  %602 = vdwg.mxu0
  %v603 = vsel %vm95, %v595, -inf
  %604 = vmax.xlane.f32.xlu0 %v603
  %v605 = vpop.xlane.xlu0 %604
  %v606 = vsel %vm95, %v600, -inf
  %607 = vmax.xlane.f32.xlu0 %v606
  %v608 = vpop.xlane.xlu0 %607
  %v609 = vsub.f32 %v595, %v605
  %v610 = vsub.f32 %v600, %v608
  %v611 = vmul.f32 %v609, 1.442695
  %v612 = vpow.pop %v611
  %v613 = vmul.f32 %v610, 1.442695
  %v614 = vpow.pop %v613
  %v616 = vsel %vm95, %v612, 0
  %v619 = vsel %vm95, %v614, 0
  %621 = vmatprep.subr.mxu0 0.0
  %622 = vmatpush1.msra.mxu0 %v191
  %623 = vmatprep.subr.mxu0 0.0
  %624 = vmatpush1.msra.mxu0 %v192
  %625 = vmatprep.subr.mxu0 0.0
  %626 = vmatpush1.msra.mxu0 %v193
  %627 = vmatprep.subr.mxu0 0.0
  %628 = vmatpush1.msra.mxu0 %v194
  %629 = vmatprep.subr.mxu0 0.0
  %630 = vmatpush1.msra.mxu0 %v195
  %631 = vmatprep.subr.mxu0 0.0
  %632 = vmatpush1.msra.mxu0 %v196
  %633 = vmatprep.subr.mxu0 0.0
  %634 = vmatpush1.msra.mxu0 %v197
  %635 = vmatprep.subr.mxu0 0.0
  %636 = vmatpush1.msra.mxu0 %v198
  %637 = vmatprep.subr.mxu0 0.0
  %638 = vmatpush1.msra.mxu0 0.0
  %639 = vmatprep.subr.mxu0 0.0
  %640 = vmatpush1.msra.mxu0 0.0
  %641 = vmatprep.subr.mxu0 0.0
  %642 = vmatpush1.msra.mxu0 0.0
  %643 = vmatprep.subr.mxu0 0.0
  %644 = vmatpush1.msra.mxu0 0.0
  %645 = vmatprep.subr.mxu0 0.0
  %646 = vmatpush1.msra.mxu0 0.0
  %647 = vmatprep.subr.mxu0 0.0
  %648 = vmatpush1.msra.mxu0 0.0
  %649 = vmatprep.subr.mxu0 0.0
  %650 = vmatpush1.msra.mxu0 0.0
  %651 = vmatprep.subr.mxu0 0.0
  %652 = vmatpush1.msra.mxu0 0.0
  %653 = vmatprep.subr.mxu0 0.0
  %654 = vmatpush1.msra.mxu0 0.0
  %655 = vmatprep.subr.mxu0 0.0
  %656 = vmatpush1.msra.mxu0 0.0
  %657 = vmatprep.subr.mxu0 0.0
  %658 = vmatpush1.msra.mxu0 0.0
  %659 = vmatprep.subr.mxu0 0.0
  %660 = vmatpush1.msra.mxu0 0.0
  %661 = vmatprep.subr.mxu0 0.0
  %662 = vmatpush1.msra.mxu0 0.0
  %663 = vmatprep.subr.mxu0 0.0
  %664 = vmatpush1.msra.mxu0 0.0
  %665 = vmatprep.subr.mxu0 0.0
  %666 = vmatpush1.msra.mxu0 0.0
  %667 = vmatprep.subr.mxu0 0.0
  %668 = vmatpush1.msra.mxu0 0.0
  %669 = vmatprep.subr.mxu0 0.0
  %670 = vmatpush1.msra.mxu0 0.0
  %671 = vmatprep.subr.mxu0 0.0
  %672 = vmatpush1.msra.mxu0 0.0
  %673 = vmatprep.subr.mxu0 0.0
  %674 = vmatpush1.msra.mxu0 0.0
  %675 = vmatprep.subr.mxu0 0.0
  %676 = vmatpush1.msra.mxu0 0.0
  %677 = vmatprep.subr.mxu0 0.0
  %678 = vmatpush1.msra.mxu0 0.0
  %679 = vmatprep.subr.mxu0 0.0
  %680 = vmatpush1.msra.mxu0 0.0
  %681 = vmatprep.subr.mxu0 0.0
  %682 = vmatpush1.msra.mxu0 0.0
  %683 = vmatprep.subr.mxu0 0.0
  %684 = vmatpush1.msra.mxu0 0.0
  %685 = vmatprep.mubr.f32.mxu0 0.0
  %686 = vmatmul.mubr.f32.gmra.mrb[0].mxu0 %v616
  %v687 = vpop.f32.mrb[0].mxu0
  %v688 = vadd.f32 0.0, %v687
  %v689 = vpop.f32.mrb[0].mxu0
  %690 = vmatprep.mubr.f32.mxu0 0.0
  %691 = vmatmul.mubr.f32.gmra.mrb[0].mxu0 %v619
  %v692 = vpop.f32.mrb[0].mxu0
  %v693 = vadd.f32 0.0, %v692
  %v694 = vpop.f32.mrb[0].mxu0
  %695 = vdwg.mxu0
  %v696 = vrcp.pop %v688
  %v697 = vrcp.pop %v693
  %v698 = vmul.f32 %v612, %v696
  %v699 = vmul.f32 %v614, %v697
  %708 = vrot.lane.b32.xlu0 %v474, 64
  %v709 = vpop.permute.xlu0 %708
  %710 = vrot.lane.b32.xlu0 %v475, 64
  %v711 = vpop.permute.xlu0 %710
  %712 = vrot.lane.b32.xlu0 %v476, 64
  %v713 = vpop.permute.xlu0 %712
  %714 = vrot.lane.b32.xlu0 %v477, 64
  %v715 = vpop.permute.xlu0 %714
  %716 = vrot.lane.b32.xlu0 %v478, 64
  %v717 = vpop.permute.xlu0 %716
  %718 = vrot.lane.b32.xlu0 %v479, 64
  %v719 = vpop.permute.xlu0 %718
  %720 = vrot.lane.b32.xlu0 %v480, 64
  %v721 = vpop.permute.xlu0 %720
  %722 = vrot.lane.b32.xlu0 %v481, 64
  %v723 = vpop.permute.xlu0 %722
  %v733 = vsel %vm95, %v698, 0
  %v736 = vsel %vm95, %v699, 0
  %738 = vmatprep.subr.mxu0 0.0
  %739 = vmatpush1.msra.mxu0 %v709
  %740 = vmatprep.subr.mxu0 0.0
  %741 = vmatpush1.msra.mxu0 %v711
  %742 = vmatprep.subr.mxu0 0.0
  %743 = vmatpush1.msra.mxu0 %v713
  %744 = vmatprep.subr.mxu0 0.0
  %745 = vmatpush1.msra.mxu0 %v715
  %746 = vmatprep.subr.mxu0 0.0
  %747 = vmatpush1.msra.mxu0 %v717
  %748 = vmatprep.subr.mxu0 0.0
  %749 = vmatpush1.msra.mxu0 %v719
  %750 = vmatprep.subr.mxu0 0.0
  %751 = vmatpush1.msra.mxu0 %v721
  %752 = vmatprep.subr.mxu0 0.0
  %753 = vmatpush1.msra.mxu0 %v723
  %754 = vmatprep.subr.mxu0 0.0
  %755 = vmatpush1.msra.mxu0 0.0
  %756 = vmatprep.subr.mxu0 0.0
  %757 = vmatpush1.msra.mxu0 0.0
  %758 = vmatprep.subr.mxu0 0.0
  %759 = vmatpush1.msra.mxu0 0.0
  %760 = vmatprep.subr.mxu0 0.0
  %761 = vmatpush1.msra.mxu0 0.0
  %762 = vmatprep.subr.mxu0 0.0
  %763 = vmatpush1.msra.mxu0 0.0
  %764 = vmatprep.subr.mxu0 0.0
  %765 = vmatpush1.msra.mxu0 0.0
  %766 = vmatprep.subr.mxu0 0.0
  %767 = vmatpush1.msra.mxu0 0.0
  %768 = vmatprep.subr.mxu0 0.0
  %769 = vmatpush1.msra.mxu0 0.0
  %770 = vmatprep.subr.mxu0 0.0
  %771 = vmatpush1.msra.mxu0 0.0
  %772 = vmatprep.subr.mxu0 0.0
  %773 = vmatpush1.msra.mxu0 0.0
  %774 = vmatprep.subr.mxu0 0.0
  %775 = vmatpush1.msra.mxu0 0.0
  %776 = vmatprep.subr.mxu0 0.0
  %777 = vmatpush1.msra.mxu0 0.0
  %778 = vmatprep.subr.mxu0 0.0
  %779 = vmatpush1.msra.mxu0 0.0
  %780 = vmatprep.subr.mxu0 0.0
  %781 = vmatpush1.msra.mxu0 0.0
  %782 = vmatprep.subr.mxu0 0.0
  %783 = vmatpush1.msra.mxu0 0.0
  %784 = vmatprep.subr.mxu0 0.0
  %785 = vmatpush1.msra.mxu0 0.0
  %786 = vmatprep.subr.mxu0 0.0
  %787 = vmatpush1.msra.mxu0 0.0
  %788 = vmatprep.subr.mxu0 0.0
  %789 = vmatpush1.msra.mxu0 0.0
  %790 = vmatprep.subr.mxu0 0.0
  %791 = vmatpush1.msra.mxu0 0.0
  %792 = vmatprep.subr.mxu0 0.0
  %793 = vmatpush1.msra.mxu0 0.0
  %794 = vmatprep.subr.mxu0 0.0
  %795 = vmatpush1.msra.mxu0 0.0
  %796 = vmatprep.subr.mxu0 0.0
  %797 = vmatpush1.msra.mxu0 0.0
  %798 = vmatprep.subr.mxu0 0.0
  %799 = vmatpush1.msra.mxu0 0.0
  %800 = vmatprep.subr.mxu0 0.0
  %801 = vmatpush1.msra.mxu0 0.0
  %802 = vmatprep.mubr.f32.mxu0 0.0
  %803 = vmatmul.mubr.f32.gmra.mrb[0].mxu0 %v733
  %v804 = vpop.f32.mrb[0].mxu0
  %v805 = vadd.f32 0.0, %v804
  %v806 = vpop.f32.mrb[0].mxu0
  %807 = vmatprep.mubr.f32.mxu0 0.0
  %808 = vmatmul.mubr.f32.gmra.mrb[0].mxu0 %v736
  %v809 = vpop.f32.mrb[0].mxu0
  %v810 = vadd.f32 0.0, %v809
  %v811 = vpop.f32.mrb[0].mxu0
  %812 = vdwg.mxu0
  %v813 = vld [vmem:[%s13] sm:$0xff]
  %v814 = vld [vmem:[%s13 + $0x8] sm:$0xff]
  %v815 = vld [vmem:[%s13 + $0x10] sm:$0xff]
  %v816 = vld [vmem:[%s13 + $0x18] sm:$0xff]
  %v817 = vld [vmem:[%s14] sm:$0x1]
  %v819 = vlaneseq
  %v820 = vshrl.u32 %v819, 7
  %v821 = vsub.s32 0, %v820
  %v822 = vrot.slane %v817, %v821
  %v825 = vsel %vm199, %v805, 0
  %v828 = vsel %vm199, %v810, 0
  %830 = vmatprep.subr.mxu0 0.0
  %831 = vmatpush1.msra.mxu0 %v813
  %832 = vmatprep.subr.mxu0 0.0
  %833 = vmatpush1.msra.mxu0 %v814
  %834 = vmatprep.subr.mxu0 0.0
  %835 = vmatpush1.msra.mxu0 %v815
  %836 = vmatprep.subr.mxu0 0.0
  %837 = vmatpush1.msra.mxu0 %v816
  %838 = vmatprep.subr.mxu0 0.0
  %839 = vmatpush1.msra.mxu0 0.0
  %840 = vmatprep.subr.mxu0 0.0
  %841 = vmatpush1.msra.mxu0 0.0
  %842 = vmatprep.subr.mxu0 0.0
  %843 = vmatpush1.msra.mxu0 0.0
  %844 = vmatprep.subr.mxu0 0.0
  %845 = vmatpush1.msra.mxu0 0.0
  %846 = vmatprep.subr.mxu0 0.0
  %847 = vmatpush1.msra.mxu0 0.0
  %848 = vmatprep.subr.mxu0 0.0
  %849 = vmatpush1.msra.mxu0 0.0
  %850 = vmatprep.subr.mxu0 0.0
  %851 = vmatpush1.msra.mxu0 0.0
  %852 = vmatprep.subr.mxu0 0.0
  %853 = vmatpush1.msra.mxu0 0.0
  %854 = vmatprep.subr.mxu0 0.0
  %855 = vmatpush1.msra.mxu0 0.0
  %856 = vmatprep.subr.mxu0 0.0
  %857 = vmatpush1.msra.mxu0 0.0
  %858 = vmatprep.subr.mxu0 0.0
  %859 = vmatpush1.msra.mxu0 0.0
  %860 = vmatprep.subr.mxu0 0.0
  %861 = vmatpush1.msra.mxu0 0.0
  %862 = vmatprep.subr.mxu0 0.0
  %863 = vmatpush1.msra.mxu0 0.0
  %864 = vmatprep.subr.mxu0 0.0
  %865 = vmatpush1.msra.mxu0 0.0
  %866 = vmatprep.subr.mxu0 0.0
  %867 = vmatpush1.msra.mxu0 0.0
  %868 = vmatprep.subr.mxu0 0.0
  %869 = vmatpush1.msra.mxu0 0.0
  %870 = vmatprep.subr.mxu0 0.0
  %871 = vmatpush1.msra.mxu0 0.0
  %872 = vmatprep.subr.mxu0 0.0
  %873 = vmatpush1.msra.mxu0 0.0
  %874 = vmatprep.subr.mxu0 0.0
  %875 = vmatpush1.msra.mxu0 0.0
  %876 = vmatprep.subr.mxu0 0.0
  %877 = vmatpush1.msra.mxu0 0.0
  %878 = vmatprep.subr.mxu0 0.0
  %879 = vmatpush1.msra.mxu0 0.0
  %880 = vmatprep.subr.mxu0 0.0
  %881 = vmatpush1.msra.mxu0 0.0
  %882 = vmatprep.subr.mxu0 0.0
  %883 = vmatpush1.msra.mxu0 0.0
  %884 = vmatprep.subr.mxu0 0.0
  %885 = vmatpush1.msra.mxu0 0.0
  %886 = vmatprep.subr.mxu0 0.0
  %887 = vmatpush1.msra.mxu0 0.0
  %888 = vmatprep.subr.mxu0 0.0
  %889 = vmatpush1.msra.mxu0 0.0
  %890 = vmatprep.subr.mxu0 0.0
  %891 = vmatpush1.msra.mxu0 0.0
  %892 = vmatprep.subr.mxu0 0.0
  %893 = vmatpush1.msra.mxu0 0.0
  %894 = vmatprep.mubr.f32.mxu0 0.0
  %895 = vmatmul.mubr.f32.gmra.mrb[0].mxu0 %v825
  %v896 = vpop.f32.mrb[0].mxu0
  %v897 = vadd.f32 %v822, %v896
  %v898 = vpop.f32.mrb[0].mxu0
  %899 = vmatprep.mubr.f32.mxu0 0.0
  %900 = vmatmul.mubr.f32.gmra.mrb[0].mxu0 %v828
  %v901 = vpop.f32.mrb[0].mxu0
  %v902 = vadd.f32 %v822, %v901
  %v903 = vpop.f32.mrb[0].mxu0
  %904 = vdwg.mxu0
  %v905 = vld [vmem:[%s15] sm:$0xff]
  %v906 = vld [vmem:[%s15 + $0x8] sm:$0xff]
  %v907 = vld [vmem:[%s15 + $0x10] sm:$0xff]
  %v908 = vld [vmem:[%s15 + $0x18] sm:$0xff]
  %v909 = vld [vmem:[%s16] sm:$0x1]
  %v911 = vlaneseq
  %v912 = vshrl.u32 %v911, 7
  %v913 = vsub.s32 0, %v912
  %v914 = vrot.slane %v909, %v913
  %v917 = vsel %vm199, %v261, 0
  %v920 = vsel %vm199, %v262, 0
  %922 = vmatprep.subr.mxu0 0.0
  %923 = vmatpush1.msra.mxu0 %v905
  %924 = vmatprep.subr.mxu0 0.0
  %925 = vmatpush1.msra.mxu0 %v906
  %926 = vmatprep.subr.mxu0 0.0
  %927 = vmatpush1.msra.mxu0 %v907
  %928 = vmatprep.subr.mxu0 0.0
  %929 = vmatpush1.msra.mxu0 %v908
  %930 = vmatprep.subr.mxu0 0.0
  %931 = vmatpush1.msra.mxu0 0.0
  %932 = vmatprep.subr.mxu0 0.0
  %933 = vmatpush1.msra.mxu0 0.0
  %934 = vmatprep.subr.mxu0 0.0
  %935 = vmatpush1.msra.mxu0 0.0
  %936 = vmatprep.subr.mxu0 0.0
  %937 = vmatpush1.msra.mxu0 0.0
  %938 = vmatprep.subr.mxu0 0.0
  %939 = vmatpush1.msra.mxu0 0.0
  %940 = vmatprep.subr.mxu0 0.0
  %941 = vmatpush1.msra.mxu0 0.0
  %942 = vmatprep.subr.mxu0 0.0
  %943 = vmatpush1.msra.mxu0 0.0
  %944 = vmatprep.subr.mxu0 0.0
  %945 = vmatpush1.msra.mxu0 0.0
  %946 = vmatprep.subr.mxu0 0.0
  %947 = vmatpush1.msra.mxu0 0.0
  %948 = vmatprep.subr.mxu0 0.0
  %949 = vmatpush1.msra.mxu0 0.0
  %950 = vmatprep.subr.mxu0 0.0
  %951 = vmatpush1.msra.mxu0 0.0
  %952 = vmatprep.subr.mxu0 0.0
  %953 = vmatpush1.msra.mxu0 0.0
  %954 = vmatprep.subr.mxu0 0.0
  %955 = vmatpush1.msra.mxu0 0.0
  %956 = vmatprep.subr.mxu0 0.0
  %957 = vmatpush1.msra.mxu0 0.0
  %958 = vmatprep.subr.mxu0 0.0
  %959 = vmatpush1.msra.mxu0 0.0
  %960 = vmatprep.subr.mxu0 0.0
  %961 = vmatpush1.msra.mxu0 0.0
  %962 = vmatprep.subr.mxu0 0.0
  %963 = vmatpush1.msra.mxu0 0.0
  %964 = vmatprep.subr.mxu0 0.0
  %965 = vmatpush1.msra.mxu0 0.0
  %966 = vmatprep.subr.mxu0 0.0
  %967 = vmatpush1.msra.mxu0 0.0
  %968 = vmatprep.subr.mxu0 0.0
  %969 = vmatpush1.msra.mxu0 0.0
  %970 = vmatprep.subr.mxu0 0.0
  %971 = vmatpush1.msra.mxu0 0.0
  %972 = vmatprep.subr.mxu0 0.0
  %973 = vmatpush1.msra.mxu0 0.0
  %974 = vmatprep.subr.mxu0 0.0
  %975 = vmatpush1.msra.mxu0 0.0
  %976 = vmatprep.subr.mxu0 0.0
  %977 = vmatpush1.msra.mxu0 0.0
  %978 = vmatprep.subr.mxu0 0.0
  %979 = vmatpush1.msra.mxu0 0.0
  %980 = vmatprep.subr.mxu0 0.0
  %981 = vmatpush1.msra.mxu0 0.0
  %982 = vmatprep.subr.mxu0 0.0
  %983 = vmatpush1.msra.mxu0 0.0
  %984 = vmatprep.subr.mxu0 0.0
  %985 = vmatpush1.msra.mxu0 0.0
  %986 = vmatprep.mubr.f32.mxu0 0.0
  %987 = vmatmul.mubr.f32.gmra.mrb[0].mxu0 %v917
  %v988 = vpop.f32.mrb[0].mxu0
  %v989 = vadd.f32 %v914, %v988
  %v990 = vpop.f32.mrb[0].mxu0
  %991 = vmatprep.mubr.f32.mxu0 0.0
  %992 = vmatmul.mubr.f32.gmra.mrb[0].mxu0 %v920
  %v993 = vpop.f32.mrb[0].mxu0
  %v994 = vadd.f32 %v914, %v993
  %v995 = vpop.f32.mrb[0].mxu0
  %996 = vdwg.mxu0
  %v997 = vmul.f32 %v989, 0.5
  %v998 = vmul.f32 %v994, 0.5
  %v999 = vmul.f32 %v989, 0.70710677
  %v1000 = vmul.f32 %v994, 0.70710677
  %v1001 = verf.f32.pop %v999
  %v1002 = verf.f32.pop %v1000
  %v1003 = vadd.f32 %v1001, 1.0
  %v1004 = vadd.f32 %v1002, 1.0
  %v1005 = vmul.f32 %v997, %v1003
  %v1006 = vmul.f32 %v998, %v1004
  %v1007 = vld [vmem:[%s17] sm:$0xff]
  %v1008 = vld [vmem:[%s17 + $0x8] sm:$0xff]
  %v1009 = vld [vmem:[%s17 + $0x10] sm:$0xff]
  %v1010 = vld [vmem:[%s17 + $0x18] sm:$0xff]
  %v1011 = vld [vmem:[%s17 + $0x20] sm:$0xff]
  %v1012 = vld [vmem:[%s17 + $0x28] sm:$0xff]
  %v1013 = vld [vmem:[%s17 + $0x30] sm:$0xff]
  %v1014 = vld [vmem:[%s17 + $0x38] sm:$0xff]
  %v1015 = vld [vmem:[%s17 + $0x40] sm:$0xff]
  %v1016 = vld [vmem:[%s17 + $0x48] sm:$0xff]
  %v1017 = vld [vmem:[%s17 + $0x50] sm:$0xff]
  %v1018 = vld [vmem:[%s17 + $0x58] sm:$0xff]
  %v1019 = vld [vmem:[%s17 + $0x60] sm:$0xff]
  %v1020 = vld [vmem:[%s17 + $0x68] sm:$0xff]
  %v1021 = vld [vmem:[%s17 + $0x70] sm:$0xff]
  %v1022 = vld [vmem:[%s17 + $0x78] sm:$0xff]
  %v1023 = vld [vmem:[%s18] sm:$0x1]
  %v1025 = vlaneseq
  %v1026 = vshrl.u32 %v1025, 7
  %v1027 = vsub.s32 0, %v1026
  %v1028 = vrot.slane %v1023, %v1027
  %1030 = vmatprep.subr.mxu0 0.0
  %1031 = vmatpush1.msra.mxu0 %v1007
  %1032 = vmatprep.subr.mxu0 0.0
  %1033 = vmatpush1.msra.mxu0 %v1008
  %1034 = vmatprep.subr.mxu0 0.0
  %1035 = vmatpush1.msra.mxu0 %v1009
  %1036 = vmatprep.subr.mxu0 0.0
  %1037 = vmatpush1.msra.mxu0 %v1010
  %1038 = vmatprep.subr.mxu0 0.0
  %1039 = vmatpush1.msra.mxu0 %v1011
  %1040 = vmatprep.subr.mxu0 0.0
  %1041 = vmatpush1.msra.mxu0 %v1012
  %1042 = vmatprep.subr.mxu0 0.0
  %1043 = vmatpush1.msra.mxu0 %v1013
  %1044 = vmatprep.subr.mxu0 0.0
  %1045 = vmatpush1.msra.mxu0 %v1014
  %1046 = vmatprep.subr.mxu0 0.0
  %1047 = vmatpush1.msra.mxu0 %v1015
  %1048 = vmatprep.subr.mxu0 0.0
  %1049 = vmatpush1.msra.mxu0 %v1016
  %1050 = vmatprep.subr.mxu0 0.0
  %1051 = vmatpush1.msra.mxu0 %v1017
  %1052 = vmatprep.subr.mxu0 0.0
  %1053 = vmatpush1.msra.mxu0 %v1018
  %1054 = vmatprep.subr.mxu0 0.0
  %1055 = vmatpush1.msra.mxu0 %v1019
  %1056 = vmatprep.subr.mxu0 0.0
  %1057 = vmatpush1.msra.mxu0 %v1020
  %1058 = vmatprep.subr.mxu0 0.0
  %1059 = vmatpush1.msra.mxu0 %v1021
  %1060 = vmatprep.subr.mxu0 0.0
  %1061 = vmatpush1.msra.mxu0 %v1022
  %1062 = vmatprep.subr.mxu0 0.0
  %1063 = vmatpush1.msra.mxu0 0.0
  %1064 = vmatprep.subr.mxu0 0.0
  %1065 = vmatpush1.msra.mxu0 0.0
  %1066 = vmatprep.subr.mxu0 0.0
  %1067 = vmatpush1.msra.mxu0 0.0
  %1068 = vmatprep.subr.mxu0 0.0
  %1069 = vmatpush1.msra.mxu0 0.0
  %1070 = vmatprep.subr.mxu0 0.0
  %1071 = vmatpush1.msra.mxu0 0.0
  %1072 = vmatprep.subr.mxu0 0.0
  %1073 = vmatpush1.msra.mxu0 0.0
  %1074 = vmatprep.subr.mxu0 0.0
  %1075 = vmatpush1.msra.mxu0 0.0
  %1076 = vmatprep.subr.mxu0 0.0
  %1077 = vmatpush1.msra.mxu0 0.0
  %1078 = vmatprep.subr.mxu0 0.0
  %1079 = vmatpush1.msra.mxu0 0.0
  %1080 = vmatprep.subr.mxu0 0.0
  %1081 = vmatpush1.msra.mxu0 0.0
  %1082 = vmatprep.subr.mxu0 0.0
  %1083 = vmatpush1.msra.mxu0 0.0
  %1084 = vmatprep.subr.mxu0 0.0
  %1085 = vmatpush1.msra.mxu0 0.0
  %1086 = vmatprep.subr.mxu0 0.0
  %1087 = vmatpush1.msra.mxu0 0.0
  %1088 = vmatprep.subr.mxu0 0.0
  %1089 = vmatpush1.msra.mxu0 0.0
  %1090 = vmatprep.subr.mxu0 0.0
  %1091 = vmatpush1.msra.mxu0 0.0
  %1092 = vmatprep.subr.mxu0 0.0
  %1093 = vmatpush1.msra.mxu0 0.0
  %1094 = vmatprep.mubr.f32.mxu0 0.0
  %1095 = vmatmul.mubr.f32.gmra.mrb[0].mxu0 %v1005
  %v1096 = vpop.f32.mrb[0].mxu0
  %v1097 = vadd.f32 %v1028, %v1096
  %v1098 = vpop.f32.mrb[0].mxu0
  %1099 = vmatprep.mubr.f32.mxu0 0.0
  %1100 = vmatmul.mubr.f32.gmra.mrb[0].mxu0 %v1006
  %v1101 = vpop.f32.mrb[0].mxu0
  %v1102 = vadd.f32 %v1028, %v1101
  %v1103 = vpop.f32.mrb[0].mxu0
  %1104 = vdwg.mxu0
  %v1105 = vadd.f32 %v169, %v897
  %v1106 = vadd.f32 %v174, %v902
  %v1107 = vadd.f32 %v1105, %v1097
  %v1108 = vadd.f32 %v1106, %v1102
  %v1109 = vsel %vm199, %v1107, 0.0
  %1110 = vadd.xlane.f32.xlu0 %v1109
  %v1111 = vpop.xlane.xlu0 %1110
  %v1112 = vsel %vm199, %v1108, 0.0
  %1113 = vadd.xlane.f32.xlu0 %v1112
  %v1114 = vpop.xlane.xlu0 %1113
  %v1115 = vmul.f32 %v1111, %v206
  %v1116 = vmul.f32 %v1114, %v206
  %v1117 = vsub.f32 %v1107, %v1115
  %v1118 = vsub.f32 %v1108, %v1116
  %v1119 = vmul.f32 %v1117, %v1117
  %v1120 = vmul.f32 %v1118, %v1118
  %v1121 = vsel %vm199, %v1119, 0.0
  %1122 = vadd.xlane.f32.xlu0 %v1121
  %v1123 = vpop.xlane.xlu0 %1122
  %v1124 = vsel %vm199, %v1120, 0.0
  %1125 = vadd.xlane.f32.xlu0 %v1124
  %v1126 = vpop.xlane.xlu0 %1125
  %v1127 = vmul.f32 %v1123, %v206
  %v1128 = vmul.f32 %v1126, %v206
  %v1129 = vadd.f32 %v1127, 1e-05
  %v1130 = vadd.f32 %v1128, 1e-05
  %v1131 = vrsqrt.pop %v1129
  %v1132 = vrsqrt.pop %v1130
  %v1133 = vmul.f32 %v1117, %v1131
  %v1134 = vmul.f32 %v1118, %v1132
  %s1135 = scalar_lea.vmem %s7, 1
  %v1136 = vld [vmem:[%s1135] sm:$0x1]
  %v1138 = vlaneseq
  %v1139 = vshrl.u32 %v1138, 7
  %v1140 = vsub.s32 0, %v1139
  %v1141 = vrot.slane %v1136, %v1140
  %v1143 = vmul.f32 %v1133, %v1141
  %v1144 = vmul.f32 %v1134, %v1141
  %s1145 = scalar_lea.vmem %s8, 1
  %v1146 = vld [vmem:[%s1145] sm:$0x1]
  %v1148 = vlaneseq
  %v1149 = vshrl.u32 %v1148, 7
  %v1150 = vsub.s32 0, %v1149
  %v1151 = vrot.slane %v1146, %v1150
  %v1153 = vadd.f32 %v1143, %v1151
  %v1154 = vadd.f32 %v1144, %v1151
  %s1155 = scalar_lea.vmem %s9, 1
  %v1156 = vld [vmem:[%s1155] sm:$0x1]
  %v1158 = vlaneseq
  %v1159 = vshrl.u32 %v1158, 7
  %v1160 = vsub.s32 0, %v1159
  %v1161 = vrot.slane %v1156, %v1160
  %v1163 = vmul.f32 %v1133, %v1161
  %v1164 = vmul.f32 %v1134, %v1161
  %s1165 = scalar_lea.vmem %s10, 1
  %v1166 = vld [vmem:[%s1165] sm:$0x1]
  %v1168 = vlaneseq
  %v1169 = vshrl.u32 %v1168, 7
  %v1170 = vsub.s32 0, %v1169
  %v1171 = vrot.slane %v1166, %v1170
  %v1173 = vadd.f32 %v1163, %v1171
  %v1174 = vadd.f32 %v1164, %v1171
  %s1175 = scalar_lea.vmem %s11, 64
  %v1176 = vld [vmem:[%s1175] sm:$0xff]
  %v1177 = vld [vmem:[%s1175 + $0x8] sm:$0xff]
  %v1178 = vld [vmem:[%s1175 + $0x10] sm:$0xff]
  %v1179 = vld [vmem:[%s1175 + $0x18] sm:$0xff]
  %v1180 = vld [vmem:[%s1175 + $0x20] sm:$0xff]
  %v1181 = vld [vmem:[%s1175 + $0x28] sm:$0xff]
  %v1182 = vld [vmem:[%s1175 + $0x30] sm:$0xff]
  %v1183 = vld [vmem:[%s1175 + $0x38] sm:$0xff]
  %s1184 = scalar_lea.vmem %s12, 2
  %v1185 = vld [vmem:[%s1184] sm:$0x3]
  %v1187 = vlaneseq
  %v1188 = vshrl.u32 %v1187, 7
  %v1189 = vsub.s32 0, %v1188
  %v1190 = vrot.slane %v1185, %v1189
  %v1191 = vlaneseq
  %v1192 = vshrl.u32 %v1191, 7
  %v1193 = vsub.s32 1, %v1192
  %v1194 = vrot.slane %v1185, %v1193
  %v1198 = vsel %vm199, %v1153, 0
  %v1201 = vsel %vm199, %v1154, 0
  %1203 = vmatprep.subr.mxu0 %v1177
  %1204 = vmatpush1.msra.mxu0 %v1176
  %1205 = vmatprep.subr.mxu0 %v1179
  %1206 = vmatpush1.msra.mxu0 %v1178
  %1207 = vmatprep.subr.mxu0 %v1181
  %1208 = vmatpush1.msra.mxu0 %v1180
  %1209 = vmatprep.subr.mxu0 %v1183
  %1210 = vmatpush1.msra.mxu0 %v1182
  %1211 = vmatprep.subr.mxu0 0.0
  %1212 = vmatpush1.msra.mxu0 0.0
  %1213 = vmatprep.subr.mxu0 0.0
  %1214 = vmatpush1.msra.mxu0 0.0
  %1215 = vmatprep.subr.mxu0 0.0
  %1216 = vmatpush1.msra.mxu0 0.0
  %1217 = vmatprep.subr.mxu0 0.0
  %1218 = vmatpush1.msra.mxu0 0.0
  %1219 = vmatprep.subr.mxu0 0.0
  %1220 = vmatpush1.msra.mxu0 0.0
  %1221 = vmatprep.subr.mxu0 0.0
  %1222 = vmatpush1.msra.mxu0 0.0
  %1223 = vmatprep.subr.mxu0 0.0
  %1224 = vmatpush1.msra.mxu0 0.0
  %1225 = vmatprep.subr.mxu0 0.0
  %1226 = vmatpush1.msra.mxu0 0.0
  %1227 = vmatprep.subr.mxu0 0.0
  %1228 = vmatpush1.msra.mxu0 0.0
  %1229 = vmatprep.subr.mxu0 0.0
  %1230 = vmatpush1.msra.mxu0 0.0
  %1231 = vmatprep.subr.mxu0 0.0
  %1232 = vmatpush1.msra.mxu0 0.0
  %1233 = vmatprep.subr.mxu0 0.0
  %1234 = vmatpush1.msra.mxu0 0.0
  %1235 = vmatprep.subr.mxu0 0.0
  %1236 = vmatpush1.msra.mxu0 0.0
  %1237 = vmatprep.subr.mxu0 0.0
  %1238 = vmatpush1.msra.mxu0 0.0
  %1239 = vmatprep.subr.mxu0 0.0
  %1240 = vmatpush1.msra.mxu0 0.0
  %1241 = vmatprep.subr.mxu0 0.0
  %1242 = vmatpush1.msra.mxu0 0.0
  %1243 = vmatprep.subr.mxu0 0.0
  %1244 = vmatpush1.msra.mxu0 0.0
  %1245 = vmatprep.subr.mxu0 0.0
  %1246 = vmatpush1.msra.mxu0 0.0
  %1247 = vmatprep.subr.mxu0 0.0
  %1248 = vmatpush1.msra.mxu0 0.0
  %1249 = vmatprep.subr.mxu0 0.0
  %1250 = vmatpush1.msra.mxu0 0.0
  %1251 = vmatprep.subr.mxu0 0.0
  %1252 = vmatpush1.msra.mxu0 0.0
  %1253 = vmatprep.subr.mxu0 0.0
  %1254 = vmatpush1.msra.mxu0 0.0
  %1255 = vmatprep.subr.mxu0 0.0
  %1256 = vmatpush1.msra.mxu0 0.0
  %1257 = vmatprep.subr.mxu0 0.0
  %1258 = vmatpush1.msra.mxu0 0.0
  %1259 = vmatprep.subr.mxu0 0.0
  %1260 = vmatpush1.msra.mxu0 0.0
  %1261 = vmatprep.subr.mxu0 0.0
  %1262 = vmatpush1.msra.mxu0 0.0
  %1263 = vmatprep.subr.mxu0 0.0
  %1264 = vmatpush1.msra.mxu0 0.0
  %1265 = vmatprep.subr.mxu0 0.0
  %1266 = vmatpush1.msra.mxu0 0.0
  %1267 = vmatprep.mubr.f32.mxu0 0.0
  %1268 = vmatmul.mubr.f32.gmra.mrb[0].mxu0 %v1198
  %v1269 = vpop.f32.mrb[0].mxu0
  %v1270 = vadd.f32 %v1190, %v1269
  %v1271 = vpop.f32.mrb[0].mxu0
  %v1272 = vadd.f32 %v1194, %v1271
  %1273 = vmatprep.mubr.f32.mxu0 0.0
  %1274 = vmatmul.mubr.f32.gmra.mrb[0].mxu0 %v1201
  %v1275 = vpop.f32.mrb[0].mxu0
  %v1276 = vadd.f32 %v1190, %v1275
  %v1277 = vpop.f32.mrb[0].mxu0
  %v1278 = vadd.f32 %v1194, %v1277
  %1279 = vdwg.mxu0
  %v1280 = vmul.f32 %v1270, %v177
  %v1281 = vmul.f32 %v1276, %v178
  %v1282 = vmul.f32 %v1270, %v371
  %v1283 = vmul.f32 %v1276, %v373
  %1286 = vrot.lane.b32.xlu0 %v1282, 32
  %v1287 = vpop.permute.xlu0 %1286
  %1288 = vrot.lane.b32.xlu0 %v1283, 32
  %v1289 = vpop.permute.xlu0 %1288
  %v1292 = vadd.f32 %v1280, %v1287
  %v1293 = vadd.f32 %v1281, %v1289
  %v1294 = vmul.f32 %v1270, %v391
  %v1295 = vmul.f32 %v1276, %v393
  %v1296 = vmul.f32 %v1272, %v179
  %v1297 = vmul.f32 %v1278, %v180
  %1300 = vrot.lane.b32.xlu0 %v1296, 32
  %v1301 = vpop.permute.xlu0 %1300
  %1302 = vrot.lane.b32.xlu0 %v1297, 32
  %v1303 = vpop.permute.xlu0 %1302
  %v1306 = vadd.f32 %v1294, %v1301
  %v1307 = vadd.f32 %v1295, %v1303
  %v1308 = vmul.f32 %v1306, %v419
  %v1309 = vmul.f32 %v1307, %v421
  %v1310 = vmul.f32 %v1306, %v423
  %v1311 = vmul.f32 %v1307, %v425
  %v1312 = vmul.f32 %v1306, %v427
  %v1313 = vmul.f32 %v1307, %v429
  %v1314 = vmul.f32 %v1306, %v431
  %v1315 = vmul.f32 %v1307, %v433
  %v1316 = vmul.f32 %v1270, %v451
  %v1317 = vmul.f32 %v1276, %v453
  %v1318 = vmul.f32 %v1270, %v455
  %v1319 = vmul.f32 %v1276, %v457
  %v1320 = vmul.f32 %v1270, %v459
  %v1321 = vmul.f32 %v1276, %v461
  %v1322 = vmul.f32 %v1270, %v463
  %v1323 = vmul.f32 %v1276, %v465
  %1332 = vrot.lane.b32.xlu0 %v1308, 96
  %v1333 = vpop.permute.xlu0 %1332
  %1334 = vrot.lane.b32.xlu0 %v1309, 96
  %v1335 = vpop.permute.xlu0 %1334
  %1336 = vrot.lane.b32.xlu0 %v1310, 96
  %v1337 = vpop.permute.xlu0 %1336
  %1338 = vrot.lane.b32.xlu0 %v1311, 96
  %v1339 = vpop.permute.xlu0 %1338
  %1340 = vrot.lane.b32.xlu0 %v1312, 96
  %v1341 = vpop.permute.xlu0 %1340
  %1342 = vrot.lane.b32.xlu0 %v1313, 96
  %v1343 = vpop.permute.xlu0 %1342
  %1344 = vrot.lane.b32.xlu0 %v1314, 96
  %v1345 = vpop.permute.xlu0 %1344
  %1346 = vrot.lane.b32.xlu0 %v1315, 96
  %v1347 = vpop.permute.xlu0 %1346
  %v1349 = vsel %vm199, %v1292, 0
  %v1352 = vsel %vm199, %v1293, 0
  %v1354 = vsel %vm199, %v1333, 0
  %v1356 = vsel %vm199, %v1335, 0
  %v1358 = vsel %vm199, %v1337, 0
  %v1360 = vsel %vm199, %v1339, 0
  %v1362 = vsel %vm199, %v1341, 0
  %v1364 = vsel %vm199, %v1343, 0
  %v1366 = vsel %vm199, %v1345, 0
  %v1368 = vsel %vm199, %v1347, 0
  %1370 = vmatprep.subr.mxu0 0.0
  %1371 = vmatpush1.xpose.msra.mxu0 %v1354
  %1372 = vmatprep.subr.mxu0 0.0
  %1373 = vmatpush1.xpose.msra.mxu0 %v1356
  %1374 = vmatprep.subr.mxu0 0.0
  %1375 = vmatpush1.xpose.msra.mxu0 %v1358
  %1376 = vmatprep.subr.mxu0 0.0
  %1377 = vmatpush1.xpose.msra.mxu0 %v1360
  %1378 = vmatprep.subr.mxu0 0.0
  %1379 = vmatpush1.xpose.msra.mxu0 %v1362
  %1380 = vmatprep.subr.mxu0 0.0
  %1381 = vmatpush1.xpose.msra.mxu0 %v1364
  %1382 = vmatprep.subr.mxu0 0.0
  %1383 = vmatpush1.xpose.msra.mxu0 %v1366
  %1384 = vmatprep.subr.mxu0 0.0
  %1385 = vmatpush1.xpose.msra.mxu0 %v1368
  %1386 = vmatprep.subr.mxu0 0.0
  %1387 = vmatpush1.xpose.msra.mxu0 0.0
  %1388 = vmatprep.subr.mxu0 0.0
  %1389 = vmatpush1.xpose.msra.mxu0 0.0
  %1390 = vmatprep.subr.mxu0 0.0
  %1391 = vmatpush1.xpose.msra.mxu0 0.0
  %1392 = vmatprep.subr.mxu0 0.0
  %1393 = vmatpush1.xpose.msra.mxu0 0.0
  %1394 = vmatprep.subr.mxu0 0.0
  %1395 = vmatpush1.xpose.msra.mxu0 0.0
  %1396 = vmatprep.subr.mxu0 0.0
  %1397 = vmatpush1.xpose.msra.mxu0 0.0
  %1398 = vmatprep.subr.mxu0 0.0
  %1399 = vmatpush1.xpose.msra.mxu0 0.0
  %1400 = vmatprep.subr.mxu0 0.0
  %1401 = vmatpush1.xpose.msra.mxu0 0.0
  %1402 = vmatprep.subr.mxu0 0.0
  %1403 = vmatpush1.xpose.msra.mxu0 0.0
  %1404 = vmatprep.subr.mxu0 0.0
  %1405 = vmatpush1.xpose.msra.mxu0 0.0
  %1406 = vmatprep.subr.mxu0 0.0
  %1407 = vmatpush1.xpose.msra.mxu0 0.0
  %1408 = vmatprep.subr.mxu0 0.0
  %1409 = vmatpush1.xpose.msra.mxu0 0.0
  %1410 = vmatprep.subr.mxu0 0.0
  %1411 = vmatpush1.xpose.msra.mxu0 0.0
  %1412 = vmatprep.subr.mxu0 0.0
  %1413 = vmatpush1.xpose.msra.mxu0 0.0
  %1414 = vmatprep.subr.mxu0 0.0
  %1415 = vmatpush1.xpose.msra.mxu0 0.0
  %1416 = vmatprep.subr.mxu0 0.0
  %1417 = vmatpush1.xpose.msra.mxu0 0.0
  %1418 = vmatprep.subr.mxu0 0.0
  %1419 = vmatpush1.xpose.msra.mxu0 0.0
  %1420 = vmatprep.subr.mxu0 0.0
  %1421 = vmatpush1.xpose.msra.mxu0 0.0
  %1422 = vmatprep.subr.mxu0 0.0
  %1423 = vmatpush1.xpose.msra.mxu0 0.0
  %1424 = vmatprep.subr.mxu0 0.0
  %1425 = vmatpush1.xpose.msra.mxu0 0.0
  %1426 = vmatprep.subr.mxu0 0.0
  %1427 = vmatpush1.xpose.msra.mxu0 0.0
  %1428 = vmatprep.subr.mxu0 0.0
  %1429 = vmatpush1.xpose.msra.mxu0 0.0
  %1430 = vmatprep.subr.mxu0 0.0
  %1431 = vmatpush1.xpose.msra.mxu0 0.0
  %1432 = vmatprep.subr.mxu0 0.0
  %1433 = vmatpush1.xpose.msra.mxu0 0.0
  %1434 = vmatprep.mubr.f32.mxu0 0.0
  %1435 = vmatmul.mubr.f32.gmra.mrb[0].mxu0 %v1349
  %v1436 = vpop.f32.mrb[0].mxu0
  %v1437 = vadd.f32 %v181, %v1436
  %v1438 = vpop.f32.mrb[0].mxu0
  %1439 = vmatprep.mubr.f32.mxu0 0.0
  %1440 = vmatmul.mubr.f32.gmra.mrb[0].mxu0 %v1352
  %v1441 = vpop.f32.mrb[0].mxu0
  %v1442 = vadd.f32 %v182, %v1441
  %v1443 = vpop.f32.mrb[0].mxu0
  %1444 = vdwg.mxu0
  %v1445 = vsel %vm95, %v1437, -inf
  %1446 = vmax.xlane.f32.xlu0 %v1445
  %v1447 = vpop.xlane.xlu0 %1446
  %v1448 = vsel %vm95, %v1442, -inf
  %1449 = vmax.xlane.f32.xlu0 %v1448
  %v1450 = vpop.xlane.xlu0 %1449
  %v1451 = vsub.f32 %v1437, %v1447
  %v1452 = vsub.f32 %v1442, %v1450
  %v1453 = vmul.f32 %v1451, 1.442695
  %v1454 = vpow.pop %v1453
  %v1455 = vmul.f32 %v1452, 1.442695
  %v1456 = vpow.pop %v1455
  %v1458 = vsel %vm95, %v1454, 0
  %v1461 = vsel %vm95, %v1456, 0
  %1463 = vmatprep.subr.mxu0 0.0
  %1464 = vmatpush1.msra.mxu0 %v191
  %1465 = vmatprep.subr.mxu0 0.0
  %1466 = vmatpush1.msra.mxu0 %v192
  %1467 = vmatprep.subr.mxu0 0.0
  %1468 = vmatpush1.msra.mxu0 %v193
  %1469 = vmatprep.subr.mxu0 0.0
  %1470 = vmatpush1.msra.mxu0 %v194
  %1471 = vmatprep.subr.mxu0 0.0
  %1472 = vmatpush1.msra.mxu0 %v195
  %1473 = vmatprep.subr.mxu0 0.0
  %1474 = vmatpush1.msra.mxu0 %v196
  %1475 = vmatprep.subr.mxu0 0.0
  %1476 = vmatpush1.msra.mxu0 %v197
  %1477 = vmatprep.subr.mxu0 0.0
  %1478 = vmatpush1.msra.mxu0 %v198
  %1479 = vmatprep.subr.mxu0 0.0
  %1480 = vmatpush1.msra.mxu0 0.0
  %1481 = vmatprep.subr.mxu0 0.0
  %1482 = vmatpush1.msra.mxu0 0.0
  %1483 = vmatprep.subr.mxu0 0.0
  %1484 = vmatpush1.msra.mxu0 0.0
  %1485 = vmatprep.subr.mxu0 0.0
  %1486 = vmatpush1.msra.mxu0 0.0
  %1487 = vmatprep.subr.mxu0 0.0
  %1488 = vmatpush1.msra.mxu0 0.0
  %1489 = vmatprep.subr.mxu0 0.0
  %1490 = vmatpush1.msra.mxu0 0.0
  %1491 = vmatprep.subr.mxu0 0.0
  %1492 = vmatpush1.msra.mxu0 0.0
  %1493 = vmatprep.subr.mxu0 0.0
  %1494 = vmatpush1.msra.mxu0 0.0
  %1495 = vmatprep.subr.mxu0 0.0
  %1496 = vmatpush1.msra.mxu0 0.0
  %1497 = vmatprep.subr.mxu0 0.0
  %1498 = vmatpush1.msra.mxu0 0.0
  %1499 = vmatprep.subr.mxu0 0.0
  %1500 = vmatpush1.msra.mxu0 0.0
  %1501 = vmatprep.subr.mxu0 0.0
  %1502 = vmatpush1.msra.mxu0 0.0
  %1503 = vmatprep.subr.mxu0 0.0
  %1504 = vmatpush1.msra.mxu0 0.0
  %1505 = vmatprep.subr.mxu0 0.0
  %1506 = vmatpush1.msra.mxu0 0.0
  %1507 = vmatprep.subr.mxu0 0.0
  %1508 = vmatpush1.msra.mxu0 0.0
  %1509 = vmatprep.subr.mxu0 0.0
  %1510 = vmatpush1.msra.mxu0 0.0
  %1511 = vmatprep.subr.mxu0 0.0
  %1512 = vmatpush1.msra.mxu0 0.0
  %1513 = vmatprep.subr.mxu0 0.0
  %1514 = vmatpush1.msra.mxu0 0.0
  %1515 = vmatprep.subr.mxu0 0.0
  %1516 = vmatpush1.msra.mxu0 0.0
  %1517 = vmatprep.subr.mxu0 0.0
  %1518 = vmatpush1.msra.mxu0 0.0
  %1519 = vmatprep.subr.mxu0 0.0
  %1520 = vmatpush1.msra.mxu0 0.0
  %1521 = vmatprep.subr.mxu0 0.0
  %1522 = vmatpush1.msra.mxu0 0.0
  %1523 = vmatprep.subr.mxu0 0.0
  %1524 = vmatpush1.msra.mxu0 0.0
  %1525 = vmatprep.subr.mxu0 0.0
  %1526 = vmatpush1.msra.mxu0 0.0
  %1527 = vmatprep.mubr.f32.mxu0 0.0
  %1528 = vmatmul.mubr.f32.gmra.mrb[0].mxu0 %v1458
  %v1529 = vpop.f32.mrb[0].mxu0
  %v1530 = vadd.f32 0.0, %v1529
  %v1531 = vpop.f32.mrb[0].mxu0
  %1532 = vmatprep.mubr.f32.mxu0 0.0
  %1533 = vmatmul.mubr.f32.gmra.mrb[0].mxu0 %v1461
  %v1534 = vpop.f32.mrb[0].mxu0
  %v1535 = vadd.f32 0.0, %v1534
  %v1536 = vpop.f32.mrb[0].mxu0
  %1537 = vdwg.mxu0
  %v1538 = vrcp.pop %v1530
  %v1539 = vrcp.pop %v1535
  %v1540 = vmul.f32 %v1454, %v1538
  %v1541 = vmul.f32 %v1456, %v1539
  %1550 = vrot.lane.b32.xlu0 %v1316, 64
  %v1551 = vpop.permute.xlu0 %1550
  %1552 = vrot.lane.b32.xlu0 %v1317, 64
  %v1553 = vpop.permute.xlu0 %1552
  %1554 = vrot.lane.b32.xlu0 %v1318, 64
  %v1555 = vpop.permute.xlu0 %1554
  %1556 = vrot.lane.b32.xlu0 %v1319, 64
  %v1557 = vpop.permute.xlu0 %1556
  %1558 = vrot.lane.b32.xlu0 %v1320, 64
  %v1559 = vpop.permute.xlu0 %1558
  %1560 = vrot.lane.b32.xlu0 %v1321, 64
  %v1561 = vpop.permute.xlu0 %1560
  %1562 = vrot.lane.b32.xlu0 %v1322, 64
  %v1563 = vpop.permute.xlu0 %1562
  %1564 = vrot.lane.b32.xlu0 %v1323, 64
  %v1565 = vpop.permute.xlu0 %1564
  %v1575 = vsel %vm95, %v1540, 0
  %v1578 = vsel %vm95, %v1541, 0
  %1580 = vmatprep.subr.mxu0 0.0
  %1581 = vmatpush1.msra.mxu0 %v1551
  %1582 = vmatprep.subr.mxu0 0.0
  %1583 = vmatpush1.msra.mxu0 %v1553
  %1584 = vmatprep.subr.mxu0 0.0
  %1585 = vmatpush1.msra.mxu0 %v1555
  %1586 = vmatprep.subr.mxu0 0.0
  %1587 = vmatpush1.msra.mxu0 %v1557
  %1588 = vmatprep.subr.mxu0 0.0
  %1589 = vmatpush1.msra.mxu0 %v1559
  %1590 = vmatprep.subr.mxu0 0.0
  %1591 = vmatpush1.msra.mxu0 %v1561
  %1592 = vmatprep.subr.mxu0 0.0
  %1593 = vmatpush1.msra.mxu0 %v1563
  %1594 = vmatprep.subr.mxu0 0.0
  %1595 = vmatpush1.msra.mxu0 %v1565
  %1596 = vmatprep.subr.mxu0 0.0
  %1597 = vmatpush1.msra.mxu0 0.0
  %1598 = vmatprep.subr.mxu0 0.0
  %1599 = vmatpush1.msra.mxu0 0.0
  %1600 = vmatprep.subr.mxu0 0.0
  %1601 = vmatpush1.msra.mxu0 0.0
  %1602 = vmatprep.subr.mxu0 0.0
  %1603 = vmatpush1.msra.mxu0 0.0
  %1604 = vmatprep.subr.mxu0 0.0
  %1605 = vmatpush1.msra.mxu0 0.0
  %1606 = vmatprep.subr.mxu0 0.0
  %1607 = vmatpush1.msra.mxu0 0.0
  %1608 = vmatprep.subr.mxu0 0.0
  %1609 = vmatpush1.msra.mxu0 0.0
  %1610 = vmatprep.subr.mxu0 0.0
  %1611 = vmatpush1.msra.mxu0 0.0
  %1612 = vmatprep.subr.mxu0 0.0
  %1613 = vmatpush1.msra.mxu0 0.0
  %1614 = vmatprep.subr.mxu0 0.0
  %1615 = vmatpush1.msra.mxu0 0.0
  %1616 = vmatprep.subr.mxu0 0.0
  %1617 = vmatpush1.msra.mxu0 0.0
  %1618 = vmatprep.subr.mxu0 0.0
  %1619 = vmatpush1.msra.mxu0 0.0
  %1620 = vmatprep.subr.mxu0 0.0
  %1621 = vmatpush1.msra.mxu0 0.0
  %1622 = vmatprep.subr.mxu0 0.0
  %1623 = vmatpush1.msra.mxu0 0.0
  %1624 = vmatprep.subr.mxu0 0.0
  %1625 = vmatpush1.msra.mxu0 0.0
  %1626 = vmatprep.subr.mxu0 0.0
  %1627 = vmatpush1.msra.mxu0 0.0
  %1628 = vmatprep.subr.mxu0 0.0
  %1629 = vmatpush1.msra.mxu0 0.0
  %1630 = vmatprep.subr.mxu0 0.0
  %1631 = vmatpush1.msra.mxu0 0.0
  %1632 = vmatprep.subr.mxu0 0.0
  %1633 = vmatpush1.msra.mxu0 0.0
  %1634 = vmatprep.subr.mxu0 0.0
  %1635 = vmatpush1.msra.mxu0 0.0
  %1636 = vmatprep.subr.mxu0 0.0
  %1637 = vmatpush1.msra.mxu0 0.0
  %1638 = vmatprep.subr.mxu0 0.0
  %1639 = vmatpush1.msra.mxu0 0.0
  %1640 = vmatprep.subr.mxu0 0.0
  %1641 = vmatpush1.msra.mxu0 0.0
  %1642 = vmatprep.subr.mxu0 0.0
  %1643 = vmatpush1.msra.mxu0 0.0
  %1644 = vmatprep.mubr.f32.mxu0 0.0
  %1645 = vmatmul.mubr.f32.gmra.mrb[0].mxu0 %v1575
  %v1646 = vpop.f32.mrb[0].mxu0
  %v1647 = vadd.f32 0.0, %v1646
  %v1648 = vpop.f32.mrb[0].mxu0
  %1649 = vmatprep.mubr.f32.mxu0 0.0
  %1650 = vmatmul.mubr.f32.gmra.mrb[0].mxu0 %v1578
  %v1651 = vpop.f32.mrb[0].mxu0
  %v1652 = vadd.f32 0.0, %v1651
  %v1653 = vpop.f32.mrb[0].mxu0
  %1654 = vdwg.mxu0
  %s1655 = scalar_lea.vmem %s13, 32
  %v1656 = vld [vmem:[%s1655] sm:$0xff]
  %v1657 = vld [vmem:[%s1655 + $0x8] sm:$0xff]
  %v1658 = vld [vmem:[%s1655 + $0x10] sm:$0xff]
  %v1659 = vld [vmem:[%s1655 + $0x18] sm:$0xff]
  %s1660 = scalar_lea.vmem %s14, 1
  %v1661 = vld [vmem:[%s1660] sm:$0x1]
  %v1663 = vlaneseq
  %v1664 = vshrl.u32 %v1663, 7
  %v1665 = vsub.s32 0, %v1664
  %v1666 = vrot.slane %v1661, %v1665
  %v1669 = vsel %vm199, %v1647, 0
  %v1672 = vsel %vm199, %v1652, 0
  %1674 = vmatprep.subr.mxu0 0.0
  %1675 = vmatpush1.msra.mxu0 %v1656
  %1676 = vmatprep.subr.mxu0 0.0
  %1677 = vmatpush1.msra.mxu0 %v1657
  %1678 = vmatprep.subr.mxu0 0.0
  %1679 = vmatpush1.msra.mxu0 %v1658
  %1680 = vmatprep.subr.mxu0 0.0
  %1681 = vmatpush1.msra.mxu0 %v1659
  %1682 = vmatprep.subr.mxu0 0.0
  %1683 = vmatpush1.msra.mxu0 0.0
  %1684 = vmatprep.subr.mxu0 0.0
  %1685 = vmatpush1.msra.mxu0 0.0
  %1686 = vmatprep.subr.mxu0 0.0
  %1687 = vmatpush1.msra.mxu0 0.0
  %1688 = vmatprep.subr.mxu0 0.0
  %1689 = vmatpush1.msra.mxu0 0.0
  %1690 = vmatprep.subr.mxu0 0.0
  %1691 = vmatpush1.msra.mxu0 0.0
  %1692 = vmatprep.subr.mxu0 0.0
  %1693 = vmatpush1.msra.mxu0 0.0
  %1694 = vmatprep.subr.mxu0 0.0
  %1695 = vmatpush1.msra.mxu0 0.0
  %1696 = vmatprep.subr.mxu0 0.0
  %1697 = vmatpush1.msra.mxu0 0.0
  %1698 = vmatprep.subr.mxu0 0.0
  %1699 = vmatpush1.msra.mxu0 0.0
  %1700 = vmatprep.subr.mxu0 0.0
  %1701 = vmatpush1.msra.mxu0 0.0
  %1702 = vmatprep.subr.mxu0 0.0
  %1703 = vmatpush1.msra.mxu0 0.0
  %1704 = vmatprep.subr.mxu0 0.0
  %1705 = vmatpush1.msra.mxu0 0.0
  %1706 = vmatprep.subr.mxu0 0.0
  %1707 = vmatpush1.msra.mxu0 0.0
  %1708 = vmatprep.subr.mxu0 0.0
  %1709 = vmatpush1.msra.mxu0 0.0
  %1710 = vmatprep.subr.mxu0 0.0
  %1711 = vmatpush1.msra.mxu0 0.0
  %1712 = vmatprep.subr.mxu0 0.0
  %1713 = vmatpush1.msra.mxu0 0.0
  %1714 = vmatprep.subr.mxu0 0.0
  %1715 = vmatpush1.msra.mxu0 0.0
  %1716 = vmatprep.subr.mxu0 0.0
  %1717 = vmatpush1.msra.mxu0 0.0
  %1718 = vmatprep.subr.mxu0 0.0
  %1719 = vmatpush1.msra.mxu0 0.0
  %1720 = vmatprep.subr.mxu0 0.0
  %1721 = vmatpush1.msra.mxu0 0.0
  %1722 = vmatprep.subr.mxu0 0.0
  %1723 = vmatpush1.msra.mxu0 0.0
  %1724 = vmatprep.subr.mxu0 0.0
  %1725 = vmatpush1.msra.mxu0 0.0
  %1726 = vmatprep.subr.mxu0 0.0
  %1727 = vmatpush1.msra.mxu0 0.0
  %1728 = vmatprep.subr.mxu0 0.0
  %1729 = vmatpush1.msra.mxu0 0.0
  %1730 = vmatprep.subr.mxu0 0.0
  %1731 = vmatpush1.msra.mxu0 0.0
  %1732 = vmatprep.subr.mxu0 0.0
  %1733 = vmatpush1.msra.mxu0 0.0
  %1734 = vmatprep.subr.mxu0 0.0
  %1735 = vmatpush1.msra.mxu0 0.0
  %1736 = vmatprep.subr.mxu0 0.0
  %1737 = vmatpush1.msra.mxu0 0.0
  %1738 = vmatprep.mubr.f32.mxu0 0.0
  %1739 = vmatmul.mubr.f32.gmra.mrb[0].mxu0 %v1669
  %v1740 = vpop.f32.mrb[0].mxu0
  %v1741 = vadd.f32 %v1666, %v1740
  %v1742 = vpop.f32.mrb[0].mxu0
  %1743 = vmatprep.mubr.f32.mxu0 0.0
  %1744 = vmatmul.mubr.f32.gmra.mrb[0].mxu0 %v1672
  %v1745 = vpop.f32.mrb[0].mxu0
  %v1746 = vadd.f32 %v1666, %v1745
  %v1747 = vpop.f32.mrb[0].mxu0
  %1748 = vdwg.mxu0
  %s1749 = scalar_lea.vmem %s15, 32
  %v1750 = vld [vmem:[%s1749] sm:$0xff]
  %v1751 = vld [vmem:[%s1749 + $0x8] sm:$0xff]
  %v1752 = vld [vmem:[%s1749 + $0x10] sm:$0xff]
  %v1753 = vld [vmem:[%s1749 + $0x18] sm:$0xff]
  %s1754 = scalar_lea.vmem %s16, 1
  %v1755 = vld [vmem:[%s1754] sm:$0x1]
  %v1757 = vlaneseq
  %v1758 = vshrl.u32 %v1757, 7
  %v1759 = vsub.s32 0, %v1758
  %v1760 = vrot.slane %v1755, %v1759
  %v1763 = vsel %vm199, %v1173, 0
  %v1766 = vsel %vm199, %v1174, 0
  %1768 = vmatprep.subr.mxu0 0.0
  %1769 = vmatpush1.msra.mxu0 %v1750
  %1770 = vmatprep.subr.mxu0 0.0
  %1771 = vmatpush1.msra.mxu0 %v1751
  %1772 = vmatprep.subr.mxu0 0.0
  %1773 = vmatpush1.msra.mxu0 %v1752
  %1774 = vmatprep.subr.mxu0 0.0
  %1775 = vmatpush1.msra.mxu0 %v1753
  %1776 = vmatprep.subr.mxu0 0.0
  %1777 = vmatpush1.msra.mxu0 0.0
  %1778 = vmatprep.subr.mxu0 0.0
  %1779 = vmatpush1.msra.mxu0 0.0
  %1780 = vmatprep.subr.mxu0 0.0
  %1781 = vmatpush1.msra.mxu0 0.0
  %1782 = vmatprep.subr.mxu0 0.0
  %1783 = vmatpush1.msra.mxu0 0.0
  %1784 = vmatprep.subr.mxu0 0.0
  %1785 = vmatpush1.msra.mxu0 0.0
  %1786 = vmatprep.subr.mxu0 0.0
  %1787 = vmatpush1.msra.mxu0 0.0
  %1788 = vmatprep.subr.mxu0 0.0
  %1789 = vmatpush1.msra.mxu0 0.0
  %1790 = vmatprep.subr.mxu0 0.0
  %1791 = vmatpush1.msra.mxu0 0.0
  %1792 = vmatprep.subr.mxu0 0.0
  %1793 = vmatpush1.msra.mxu0 0.0
  %1794 = vmatprep.subr.mxu0 0.0
  %1795 = vmatpush1.msra.mxu0 0.0
  %1796 = vmatprep.subr.mxu0 0.0
  %1797 = vmatpush1.msra.mxu0 0.0
  %1798 = vmatprep.subr.mxu0 0.0
  %1799 = vmatpush1.msra.mxu0 0.0
  %1800 = vmatprep.subr.mxu0 0.0
  %1801 = vmatpush1.msra.mxu0 0.0
  %1802 = vmatprep.subr.mxu0 0.0
  %1803 = vmatpush1.msra.mxu0 0.0
  %1804 = vmatprep.subr.mxu0 0.0
  %1805 = vmatpush1.msra.mxu0 0.0
  %1806 = vmatprep.subr.mxu0 0.0
  %1807 = vmatpush1.msra.mxu0 0.0
  %1808 = vmatprep.subr.mxu0 0.0
  %1809 = vmatpush1.msra.mxu0 0.0
  %1810 = vmatprep.subr.mxu0 0.0
  %1811 = vmatpush1.msra.mxu0 0.0
  %1812 = vmatprep.subr.mxu0 0.0
  %1813 = vmatpush1.msra.mxu0 0.0
  %1814 = vmatprep.subr.mxu0 0.0
  %1815 = vmatpush1.msra.mxu0 0.0
  %1816 = vmatprep.subr.mxu0 0.0
  %1817 = vmatpush1.msra.mxu0 0.0
  %1818 = vmatprep.subr.mxu0 0.0
  %1819 = vmatpush1.msra.mxu0 0.0
  %1820 = vmatprep.subr.mxu0 0.0
  %1821 = vmatpush1.msra.mxu0 0.0
  %1822 = vmatprep.subr.mxu0 0.0
  %1823 = vmatpush1.msra.mxu0 0.0
  %1824 = vmatprep.subr.mxu0 0.0
  %1825 = vmatpush1.msra.mxu0 0.0
  %1826 = vmatprep.subr.mxu0 0.0
  %1827 = vmatpush1.msra.mxu0 0.0
  %1828 = vmatprep.subr.mxu0 0.0
  %1829 = vmatpush1.msra.mxu0 0.0
  %1830 = vmatprep.subr.mxu0 0.0
  %1831 = vmatpush1.msra.mxu0 0.0
  %1832 = vmatprep.mubr.f32.mxu0 0.0
  %1833 = vmatmul.mubr.f32.gmra.mrb[0].mxu0 %v1763
  %v1834 = vpop.f32.mrb[0].mxu0
  %v1835 = vadd.f32 %v1760, %v1834
  %v1836 = vpop.f32.mrb[0].mxu0
  %1837 = vmatprep.mubr.f32.mxu0 0.0
  %1838 = vmatmul.mubr.f32.gmra.mrb[0].mxu0 %v1766
  %v1839 = vpop.f32.mrb[0].mxu0
  %v1840 = vadd.f32 %v1760, %v1839
  %v1841 = vpop.f32.mrb[0].mxu0
  %1842 = vdwg.mxu0
  %v1843 = vmul.f32 %v1835, 0.5
  %v1844 = vmul.f32 %v1840, 0.5
  %v1845 = vmul.f32 %v1835, 0.70710677
  %v1846 = vmul.f32 %v1840, 0.70710677
  %v1847 = verf.f32.pop %v1845
  %v1848 = verf.f32.pop %v1846
  %v1849 = vadd.f32 %v1847, 1.0
  %v1850 = vadd.f32 %v1848, 1.0
  %v1851 = vmul.f32 %v1843, %v1849
  %v1852 = vmul.f32 %v1844, %v1850
  %s1853 = scalar_lea.vmem %s17, 128
  %v1854 = vld [vmem:[%s1853] sm:$0xff]
  %v1855 = vld [vmem:[%s1853 + $0x8] sm:$0xff]
  %v1856 = vld [vmem:[%s1853 + $0x10] sm:$0xff]
  %v1857 = vld [vmem:[%s1853 + $0x18] sm:$0xff]
  %v1858 = vld [vmem:[%s1853 + $0x20] sm:$0xff]
  %v1859 = vld [vmem:[%s1853 + $0x28] sm:$0xff]
  %v1860 = vld [vmem:[%s1853 + $0x30] sm:$0xff]
  %v1861 = vld [vmem:[%s1853 + $0x38] sm:$0xff]
  %v1862 = vld [vmem:[%s1853 + $0x40] sm:$0xff]
  %v1863 = vld [vmem:[%s1853 + $0x48] sm:$0xff]
  %v1864 = vld [vmem:[%s1853 + $0x50] sm:$0xff]
  %v1865 = vld [vmem:[%s1853 + $0x58] sm:$0xff]
  %v1866 = vld [vmem:[%s1853 + $0x60] sm:$0xff]
  %v1867 = vld [vmem:[%s1853 + $0x68] sm:$0xff]
  %v1868 = vld [vmem:[%s1853 + $0x70] sm:$0xff]
  %v1869 = vld [vmem:[%s1853 + $0x78] sm:$0xff]
  %s1870 = scalar_lea.vmem %s18, 1
  %v1871 = vld [vmem:[%s1870] sm:$0x1]
  %v1873 = vlaneseq
  %v1874 = vshrl.u32 %v1873, 7
  %v1875 = vsub.s32 0, %v1874
  %v1876 = vrot.slane %v1871, %v1875
  %1878 = vmatprep.subr.mxu0 0.0
  %1879 = vmatpush1.msra.mxu0 %v1854
  %1880 = vmatprep.subr.mxu0 0.0
  %1881 = vmatpush1.msra.mxu0 %v1855
  %1882 = vmatprep.subr.mxu0 0.0
  %1883 = vmatpush1.msra.mxu0 %v1856
  %1884 = vmatprep.subr.mxu0 0.0
  %1885 = vmatpush1.msra.mxu0 %v1857
  %1886 = vmatprep.subr.mxu0 0.0
  %1887 = vmatpush1.msra.mxu0 %v1858
  %1888 = vmatprep.subr.mxu0 0.0
  %1889 = vmatpush1.msra.mxu0 %v1859
  %1890 = vmatprep.subr.mxu0 0.0
  %1891 = vmatpush1.msra.mxu0 %v1860
  %1892 = vmatprep.subr.mxu0 0.0
  %1893 = vmatpush1.msra.mxu0 %v1861
  %1894 = vmatprep.subr.mxu0 0.0
  %1895 = vmatpush1.msra.mxu0 %v1862
  %1896 = vmatprep.subr.mxu0 0.0
  %1897 = vmatpush1.msra.mxu0 %v1863
  %1898 = vmatprep.subr.mxu0 0.0
  %1899 = vmatpush1.msra.mxu0 %v1864
  %1900 = vmatprep.subr.mxu0 0.0
  %1901 = vmatpush1.msra.mxu0 %v1865
  %1902 = vmatprep.subr.mxu0 0.0
  %1903 = vmatpush1.msra.mxu0 %v1866
  %1904 = vmatprep.subr.mxu0 0.0
  %1905 = vmatpush1.msra.mxu0 %v1867
  %1906 = vmatprep.subr.mxu0 0.0
  %1907 = vmatpush1.msra.mxu0 %v1868
  %1908 = vmatprep.subr.mxu0 0.0
  %1909 = vmatpush1.msra.mxu0 %v1869
  %1910 = vmatprep.subr.mxu0 0.0
  %1911 = vmatpush1.msra.mxu0 0.0
  %1912 = vmatprep.subr.mxu0 0.0
  %1913 = vmatpush1.msra.mxu0 0.0
  %1914 = vmatprep.subr.mxu0 0.0
  %1915 = vmatpush1.msra.mxu0 0.0
  %1916 = vmatprep.subr.mxu0 0.0
  %1917 = vmatpush1.msra.mxu0 0.0
  %1918 = vmatprep.subr.mxu0 0.0
  %1919 = vmatpush1.msra.mxu0 0.0
  %1920 = vmatprep.subr.mxu0 0.0
  %1921 = vmatpush1.msra.mxu0 0.0
  %1922 = vmatprep.subr.mxu0 0.0
  %1923 = vmatpush1.msra.mxu0 0.0
  %1924 = vmatprep.subr.mxu0 0.0
  %1925 = vmatpush1.msra.mxu0 0.0
  %1926 = vmatprep.subr.mxu0 0.0
  %1927 = vmatpush1.msra.mxu0 0.0
  %1928 = vmatprep.subr.mxu0 0.0
  %1929 = vmatpush1.msra.mxu0 0.0
  %1930 = vmatprep.subr.mxu0 0.0
  %1931 = vmatpush1.msra.mxu0 0.0
  %1932 = vmatprep.subr.mxu0 0.0
  %1933 = vmatpush1.msra.mxu0 0.0
  %1934 = vmatprep.subr.mxu0 0.0
  %1935 = vmatpush1.msra.mxu0 0.0
  %1936 = vmatprep.subr.mxu0 0.0
  %1937 = vmatpush1.msra.mxu0 0.0
  %1938 = vmatprep.subr.mxu0 0.0
  %1939 = vmatpush1.msra.mxu0 0.0
  %1940 = vmatprep.subr.mxu0 0.0
  %1941 = vmatpush1.msra.mxu0 0.0
  %1942 = vmatprep.mubr.f32.mxu0 0.0
  %1943 = vmatmul.mubr.f32.gmra.mrb[0].mxu0 %v1851
  %v1944 = vpop.f32.mrb[0].mxu0
  %v1945 = vadd.f32 %v1876, %v1944
  %v1946 = vpop.f32.mrb[0].mxu0
  %1947 = vmatprep.mubr.f32.mxu0 0.0
  %1948 = vmatmul.mubr.f32.gmra.mrb[0].mxu0 %v1852
  %v1949 = vpop.f32.mrb[0].mxu0
  %v1950 = vadd.f32 %v1876, %v1949
  %v1951 = vpop.f32.mrb[0].mxu0
  %1952 = vdwg.mxu0
  %v1953 = vadd.f32 %v1107, %v1741
  %v1954 = vadd.f32 %v1108, %v1746
  %v1955 = vadd.f32 %v1953, %v1945
  %v1956 = vadd.f32 %v1954, %v1950
  %v1957 = vsel %vm199, %v1955, 0.0
  %1958 = vadd.xlane.f32.xlu0 %v1957
  %v1959 = vpop.xlane.xlu0 %1958
  %v1960 = vsel %vm199, %v1956, 0.0
  %1961 = vadd.xlane.f32.xlu0 %v1960
  %v1962 = vpop.xlane.xlu0 %1961
  %v1963 = vmul.f32 %v1959, %v206
  %v1964 = vmul.f32 %v1962, %v206
  %v1965 = vsub.f32 %v1955, %v1963
  %v1966 = vsub.f32 %v1956, %v1964
  %v1967 = vmul.f32 %v1965, %v1965
  %v1968 = vmul.f32 %v1966, %v1966
  %v1969 = vsel %vm199, %v1967, 0.0
  %1970 = vadd.xlane.f32.xlu0 %v1969
  %v1971 = vpop.xlane.xlu0 %1970
  %v1972 = vsel %vm199, %v1968, 0.0
  %1973 = vadd.xlane.f32.xlu0 %v1972
  %v1974 = vpop.xlane.xlu0 %1973
  %v1975 = vmul.f32 %v1971, %v206
  %v1976 = vmul.f32 %v1974, %v206
  %v1977 = vadd.f32 %v1975, 1e-05
  %v1978 = vadd.f32 %v1976, 1e-05
  %v1979 = vrsqrt.pop %v1977
  %v1980 = vrsqrt.pop %v1978
  %v1981 = vmul.f32 %v1965, %v1979
  %v1982 = vmul.f32 %v1966, %v1980
  %v1983 = vld [vmem:[%s19] sm:$0x1]
  %v1985 = vlaneseq
  %v1986 = vshrl.u32 %v1985, 7
  %v1987 = vsub.s32 0, %v1986
  %v1988 = vrot.slane %v1983, %v1987
  %v1990 = vmul.f32 %v1981, %v1988
  %v1991 = vmul.f32 %v1982, %v1988
  %v1992 = vld [vmem:[%s20] sm:$0x1]
  %v1994 = vlaneseq
  %v1995 = vshrl.u32 %v1994, 7
  %v1996 = vsub.s32 0, %v1995
  %v1997 = vrot.slane %v1992, %v1996
  %v1999 = vadd.f32 %v1990, %v1997
  %v2000 = vadd.f32 %v1991, %v1997
  %v2001 = vld [vmem:[%s21] sm:$0xff]
  %v2002 = vld [vmem:[%s21 + $0x8] sm:$0xff]
  %v2003 = vld [vmem:[%s21 + $0x10] sm:$0xff]
  %v2004 = vld [vmem:[%s21 + $0x18] sm:$0xff]
  %v2006 = vsel %vm199, %v1999, 0
  %v2009 = vsel %vm199, %v2000, 0
  %2011 = vmatprep.subr.mxu0 0.0
  %2012 = vmatpush1.msra.mxu0 %v2001
  %2013 = vmatprep.subr.mxu0 0.0
  %2014 = vmatpush1.msra.mxu0 %v2002
  %2015 = vmatprep.subr.mxu0 0.0
  %2016 = vmatpush1.msra.mxu0 %v2003
  %2017 = vmatprep.subr.mxu0 0.0
  %2018 = vmatpush1.msra.mxu0 %v2004
  %2019 = vmatprep.subr.mxu0 0.0
  %2020 = vmatpush1.msra.mxu0 0.0
  %2021 = vmatprep.subr.mxu0 0.0
  %2022 = vmatpush1.msra.mxu0 0.0
  %2023 = vmatprep.subr.mxu0 0.0
  %2024 = vmatpush1.msra.mxu0 0.0
  %2025 = vmatprep.subr.mxu0 0.0
  %2026 = vmatpush1.msra.mxu0 0.0
  %2027 = vmatprep.subr.mxu0 0.0
  %2028 = vmatpush1.msra.mxu0 0.0
  %2029 = vmatprep.subr.mxu0 0.0
  %2030 = vmatpush1.msra.mxu0 0.0
  %2031 = vmatprep.subr.mxu0 0.0
  %2032 = vmatpush1.msra.mxu0 0.0
  %2033 = vmatprep.subr.mxu0 0.0
  %2034 = vmatpush1.msra.mxu0 0.0
  %2035 = vmatprep.subr.mxu0 0.0
  %2036 = vmatpush1.msra.mxu0 0.0
  %2037 = vmatprep.subr.mxu0 0.0
  %2038 = vmatpush1.msra.mxu0 0.0
  %2039 = vmatprep.subr.mxu0 0.0
  %2040 = vmatpush1.msra.mxu0 0.0
  %2041 = vmatprep.subr.mxu0 0.0
  %2042 = vmatpush1.msra.mxu0 0.0
  %2043 = vmatprep.subr.mxu0 0.0
  %2044 = vmatpush1.msra.mxu0 0.0
  %2045 = vmatprep.subr.mxu0 0.0
  %2046 = vmatpush1.msra.mxu0 0.0
  %2047 = vmatprep.subr.mxu0 0.0
  %2048 = vmatpush1.msra.mxu0 0.0
  %2049 = vmatprep.subr.mxu0 0.0
  %2050 = vmatpush1.msra.mxu0 0.0
  %2051 = vmatprep.subr.mxu0 0.0
  %2052 = vmatpush1.msra.mxu0 0.0
  %2053 = vmatprep.subr.mxu0 0.0
  %2054 = vmatpush1.msra.mxu0 0.0
  %2055 = vmatprep.subr.mxu0 0.0
  %2056 = vmatpush1.msra.mxu0 0.0
  %2057 = vmatprep.subr.mxu0 0.0
  %2058 = vmatpush1.msra.mxu0 0.0
  %2059 = vmatprep.subr.mxu0 0.0
  %2060 = vmatpush1.msra.mxu0 0.0
  %2061 = vmatprep.subr.mxu0 0.0
  %2062 = vmatpush1.msra.mxu0 0.0
  %2063 = vmatprep.subr.mxu0 0.0
  %2064 = vmatpush1.msra.mxu0 0.0
  %2065 = vmatprep.subr.mxu0 0.0
  %2066 = vmatpush1.msra.mxu0 0.0
  %2067 = vmatprep.subr.mxu0 0.0
  %2068 = vmatpush1.msra.mxu0 0.0
  %2069 = vmatprep.subr.mxu0 0.0
  %2070 = vmatpush1.msra.mxu0 0.0
  %2071 = vmatprep.subr.mxu0 0.0
  %2072 = vmatpush1.msra.mxu0 0.0
  %2073 = vmatprep.subr.mxu0 0.0
  %2074 = vmatpush1.msra.mxu0 0.0
  %2075 = vmatprep.mubr.f32.mxu0 0.0
  %2076 = vmatmul.mubr.f32.gmra.mrb[0].mxu0 %v2006
  %v2077 = vpop.f32.mrb[0].mxu0
  %v2078 = vadd.f32 0.0, %v2077
  %v2079 = vpop.f32.mrb[0].mxu0
  %2080 = vmatprep.mubr.f32.mxu0 0.0
  %2081 = vmatmul.mubr.f32.gmra.mrb[0].mxu0 %v2009
  %v2082 = vpop.f32.mrb[0].mxu0
  %v2083 = vadd.f32 0.0, %v2082
  %v2084 = vpop.f32.mrb[0].mxu0
  %2085 = vdwg.mxu0
  %2086 = vst [vmem:[%s22] sm:$0xff] %v2078
  %2087 = vst [vmem:[%s22 + $0x8] sm:$0xff] %v2083
  // Predicated region
  $region90: #{gpt_neox_forward.1} parent=0 // pred_check
    _
  $region91: #{gpt_neox_forward.1} parent=0 // pred_check_branch
    %2089 = sbr.rel (0) target = $region93
  $region92: #{gpt_neox_forward.1} parent=0 // pred_region
    _
  $region93: #{gpt_neox_forward.1} parent=0 // pred_fallthru
    _
  // Predicated region
  $region94: #{gpt_neox_forward.1} parent=0 // pred_check
    _
  $region95: #{gpt_neox_forward.1} parent=0 // pred_check_branch
    %2091 = sbr.rel (0) target = $region97
  $region96: #{gpt_neox_forward.1} parent=0 // pred_region
    _
  $region97: #{gpt_neox_forward.1} parent=0 // pred_fallthru
    _

</llo_original>
